<compile_context>
chip_gen: v5e
topology: v5e:2x2
jax: 0.10.0
libtpu: 0.0.40
codegen_flags: <defaults>
</compile_context>

<pallas_src>
import jax
import jax.numpy as jnp
from jax.experimental import pallas as pl
from jax.experimental.pallas import tpu as pltpu


# ---------------------------------------------------------------------------
# Small helpers
# ---------------------------------------------------------------------------
def _upsample_nearest_2x(x):
    """F.interpolate(x, scale_factor=2, mode='nearest') for NCHW tensors."""
    return jnp.repeat(jnp.repeat(x, 2, axis=2), 2, axis=3)


def _vmem_capacity_bytes():
    """Physical VMEM per TensorCore; conservative (v7x) fallback if unknown."""
    try:
        info = pltpu.get_tpu_info()
        cap = getattr(info, "vmem_capacity_bytes", None)
        if cap:
            return int(cap)
    except Exception:
        pass
    return 64 << 20


def _vmem_limit(need_bytes, capacity):
    cap = max(capacity - (8 << 20), 16 << 20)
    return int(min(max(int(need_bytes) + (2 << 20), 16 << 20), cap))


def _round_up(x, m):
    return ((x + m - 1) // m) * m


def _choose_hw_tile(hw_pad, bytes_per_hw, budget_bytes):
    """Largest multiple-of-128 tile dividing hw_pad whose (double-buffered)
    working set fits the budget; 128 is the lane-dense floor."""
    best = 128
    t = 128
    while t <= hw_pad:
        if hw_pad % t == 0 and bytes_per_hw * t <= budget_bytes:
            best = t
        t += 128
    return min(best, hw_pad)


def _split_cols(w, sizes):
    parts, off = [], 0
    for s in sizes:
        parts.append(w[:, off:off + s])
        off += s
    return parts


def _split_rows(w, sizes):
    parts, off = [], 0
    for s in sizes:
        parts.append(w[off:off + s])
        off += s
    return parts


# ---------------------------------------------------------------------------
# Fused single-pass kernel: pool + SE MLP + sigmoid gate + 1x1 conv + ReLU
# (grid over batch only; each source's full (C_src, HW) slab is VMEM-resident)
# ---------------------------------------------------------------------------
def _make_fused_kernel(n_src, inv_hw):
    def kernel(*refs):
        x_refs = refs[0:n_src]                         # (1, C_src_i, HW) each
        fc1_refs = refs[n_src:2 * n_src]               # (C_hid, C_src_i)
        b1_ref = refs[2 * n_src]                       # (C_hid, 1)
        fc2_refs = refs[2 * n_src + 1:3 * n_src + 1]   # (C_src_i, C_hid)
        fc2b_refs = refs[3 * n_src + 1:4 * n_src + 1]  # (C_src_i, 1)
        sew_refs = refs[4 * n_src + 1:5 * n_src + 1]   # (C_out, C_src_i)
        seb_ref = refs[5 * n_src + 1]                  # (C_out, 1)
        o_ref = refs[5 * n_src + 2]                    # (1, C_out, HW)
        f32 = jnp.float32

        # Squeeze: per-source spatial means folded directly into fc1.
        h = b1_ref[...].astype(f32)
        for i in range(n_src):
            s = jnp.sum(x_refs[i][0].astype(f32), axis=-1, keepdims=True) * inv_hw
            h = h + jnp.dot(fc1_refs[i][...].astype(f32), s,
                            preferred_element_type=f32)
        h = jnp.maximum(h, 0.0)                        # (C_hid, 1)

        # Excite + gated 1x1 conv, one MXU matmul per source.  The gate is
        # applied to the activations in f32 as a column broadcast (a (C,1) ->
        # (1,C) relayout for weight-folding is avoided inside the kernel; the
        # extra VPU multiplies are ~3% of the MXU work and the pass is
        # HBM-bound anyway).
        acc = None
        for i in range(n_src):
            z = jnp.dot(fc2_refs[i][...].astype(f32), h,
                        preferred_element_type=f32) + fc2b_refs[i][...].astype(f32)
            gate = jax.nn.sigmoid(z)                   # (C_src_i, 1) f32
            x = x_refs[i][0]
            xg = (x.astype(f32) * gate).astype(x.dtype)
            part = jnp.dot(sew_refs[i][...].astype(x.dtype), xg,
                           preferred_element_type=f32)  # (C_out, HW)
            acc = part if acc is None else acc + part
        acc = acc + seb_ref[...].astype(f32)
        o_ref[0] = jnp.maximum(acc, 0.0).astype(o_ref.dtype)

    return kernel


# ---------------------------------------------------------------------------
# Tiled fallback, pass 1: per-(batch, spatial-tile) partial channel sums.
# Fully parallel grid (no accumulator carry) -> megacore-friendly at batch 1.
# ---------------------------------------------------------------------------
def _make_partial_sum_kernel(n_src):
    def kernel(*refs):
        x_refs = refs[:n_src]          # (1, C_src_i, hw_tile)
        o_refs = refs[n_src:]          # (1, 1, C_src_i, 1)
        for i in range(n_src):
            o_refs[i][0, 0] = jnp.sum(x_refs[i][0].astype(jnp.float32),
                                      axis=-1, keepdims=True)

    return kernel


# ---------------------------------------------------------------------------
# Tiled fallback, pass 2: out = relu(sum_i w_gated_i @ x_i + b).
# The SE gate is pre-folded (in f32) into per-batch weight blocks in XLA.
# ---------------------------------------------------------------------------
def _make_gated_conv_kernel(n_src):
    def kernel(*refs):
        x_refs = refs[:n_src]              # (1, C_src_i, hw_tile)
        w_refs = refs[n_src:2 * n_src]     # (1, C_out, C_src_i), gate pre-folded
        b_ref = refs[2 * n_src]            # (C_out, 1)
        o_ref = refs[2 * n_src + 1]        # (1, C_out, hw_tile)
        acc = None
        for i in range(n_src):
            x = x_refs[i][0]
            w = w_refs[i][0].astype(x.dtype)
            part = jnp.dot(w, x, preferred_element_type=jnp.float32)
            acc = part if acc is None else acc + part
        acc = acc + b_ref[...].astype(jnp.float32)
        o_ref[0] = jnp.maximum(acc, 0.0).astype(o_ref.dtype)

    return kernel


# ---------------------------------------------------------------------------
# Public wrapper mirroring fSEModule.forward
# ---------------------------------------------------------------------------
def fse_module_forward(high_features, low_features, params, *,
                       mode="auto", hw_tile=None):
    """params: fc1_w (C_hid,C_in), fc1_b (C_hid,), fc2_w (C_in,C_hid),
    fc2_b (C_in,), se_w (C_out,C_in), se_b (C_out,)."""
    up = _upsample_nearest_2x(high_features)
    srcs = [up] + list(low_features)            # channel concat is fused in-kernel
    B, _, H2, W2 = up.shape
    HW = H2 * W2
    c_srcs = [int(x.shape[1]) for x in srcs]
    C_in = sum(c_srcs)
    dtype = srcs[0].dtype
    itemsize = jnp.dtype(dtype).itemsize

    fc1_w = params["fc1_w"].astype(jnp.float32)
    fc1_b = params["fc1_b"].astype(jnp.float32).reshape(-1, 1)
    fc2_w = params["fc2_w"].astype(jnp.float32)
    fc2_b = params["fc2_b"].astype(jnp.float32).reshape(-1, 1)
    se_w = params["se_w"].astype(jnp.float32)
    se_b = params["se_b"].astype(jnp.float32).reshape(-1, 1)
    C_hid = fc1_w.shape[0]
    C_out = se_w.shape[0]

    # Per-source weight blocks (tiny XLA slices) so kernels consume the sources
    # directly in concat order without materializing the concatenated tensor.
    fc1_ws = _split_cols(fc1_w, c_srcs)
    fc2_ws = _split_rows(fc2_w, c_srcs)
    fc2_bs = _split_rows(fc2_b, c_srcs)
    se_ws = _split_cols(se_w, c_srcs)

    x3 = [x.reshape(B, c, HW) for x, c in zip(srcs, c_srcs)]
    n_src = len(x3)

    capacity = _vmem_capacity_bytes()
    weight_bytes = 4 * (fc1_w.size + fc1_b.size + fc2_w.size + fc2_b.size
                        + se_w.size + se_b.size)
    fused_need = 2 * (C_in + C_out) * HW * itemsize + weight_bytes
    fused_budget = (24 << 20) if capacity <= (64 << 20) else (48 << 20)

    # ---------------- fused single-pass path (feature slab read once) --------
    if mode == "fused" or (mode == "auto" and fused_need <= fused_budget):
        in_specs, args = [], []
        for x, c in zip(x3, c_srcs):
            in_specs.append(pl.BlockSpec((1, c, HW), lambda b: (b, 0, 0)))
            args.append(x)
        for w in fc1_ws:
            in_specs.append(pl.BlockSpec(w.shape, lambda b: (0, 0)))
            args.append(w)
        in_specs.append(pl.BlockSpec(fc1_b.shape, lambda b: (0, 0)))
        args.append(fc1_b)
        for w in fc2_ws:
            in_specs.append(pl.BlockSpec(w.shape, lambda b: (0, 0)))
            args.append(w)
        for w in fc2_bs:
            in_specs.append(pl.BlockSpec(w.shape, lambda b: (0, 0)))
            args.append(w)
        for w in se_ws:
            in_specs.append(pl.BlockSpec(w.shape, lambda b: (0, 0)))
            args.append(w)
        in_specs.append(pl.BlockSpec(se_b.shape, lambda b: (0, 0)))
        args.append(se_b)

        out3 = pl.pallas_call(
            _make_fused_kernel(n_src, 1.0 / float(HW)),
            out_shape=jax.ShapeDtypeStruct((B, C_out, HW), dtype),
            grid=(B,),
            in_specs=in_specs,
            out_specs=pl.BlockSpec((1, C_out, HW), lambda b: (b, 0, 0)),
            compiler_params=pltpu.CompilerParams(
                dimension_semantics=("parallel",),
                vmem_limit_bytes=_vmem_limit(fused_need, capacity)),
            cost_estimate=pl.CostEstimate(
                flops=int(B * HW * (2 * C_in + 2 * C_out * C_in)),
                transcendentals=int(B * C_in),
                bytes_accessed=int(B * (C_in + C_out) * HW * itemsize
                                   + weight_bytes)),
        )(*args)
        return out3.reshape(B, C_out, H2, W2)

    # ---------------- tiled two-pass fallback (large spatial extents) --------
    HW_pad = _round_up(HW, 128)
    if hw_tile is None:
        budget = (32 << 20) if capacity > (96 << 20) else (16 << 20)
        hw_tile = _choose_hw_tile(HW_pad, 2 * (C_in + C_out) * itemsize, budget)
    assert hw_tile % 128 == 0 and HW_pad % hw_tile == 0, \
        "hw_tile must be a multiple of 128 dividing the padded spatial extent"
    n_hw = HW_pad // hw_tile
    if HW_pad != HW:
        # TODO(synk): zero-padding materializes one copy of each source in HBM;
        # a masked last tile would avoid it.
        x3 = [jnp.pad(x, ((0, 0), (0, 0), (0, HW_pad - HW))) for x in x3]

    grid = (B, n_hw)

    # Pass 1: per-tile partial channel sums (fully parallel; zeros in the pad
    # region contribute nothing).
    sums_need = 2 * C_in * hw_tile * itemsize + 2 * C_in * 4
    partials = pl.pallas_call(
        _make_partial_sum_kernel(n_src),
        out_shape=tuple(jax.ShapeDtypeStruct((B, n_hw, c, 1), jnp.float32)
                        for c in c_srcs),
        grid=grid,
        in_specs=[pl.BlockSpec((1, c, hw_tile), lambda b, s: (b, 0, s))
                  for c in c_srcs],
        out_specs=tuple(pl.BlockSpec((1, 1, c, 1), lambda b, s: (b, s, 0, 0))
                        for c in c_srcs),
        compiler_params=pltpu.CompilerParams(
            dimension_semantics=("parallel", "parallel"),
            vmem_limit_bytes=_vmem_limit(sums_need, capacity)),
        cost_estimate=pl.CostEstimate(
            flops=int(B * C_in * HW_pad), transcendentals=0,
            bytes_accessed=int(B * C_in * HW_pad * itemsize)),
    )(*x3)

    # Tiny SE MLP + sigmoid on the pooled vector in plain XLA ((B,C_in) shaped
    # matmuls are better formed than N=1 in-kernel dots, and cost microseconds).
    pooled = jnp.concatenate([p.sum(axis=1)[..., 0] for p in partials], axis=-1)
    avg = pooled * (1.0 / float(HW))                              # true HW
    hid = jnp.maximum(avg @ fc1_w.T + fc1_b[:, 0], 0.0)
    gate = jax.nn.sigmoid(hid @ fc2_w.T + fc2_b[:, 0])            # (B, C_in) f32

    # Fold the gate into per-(batch, source) conv_se weight blocks in f32.
    gates = _split_cols(gate, c_srcs)
    w_gated = [sw[None, :, :] * g[:, None, :] for sw, g in zip(se_ws, gates)]

    # Pass 2: gated 1x1 conv + bias + ReLU, fully parallel grid.
    conv_need = (2 * (C_in + C_out) * hw_tile * itemsize
                 + 2 * (C_out * C_in + C_out) * 4)
    in_specs = ([pl.BlockSpec((1, c, hw_tile), lambda b, s: (b, 0, s))
                 for c in c_srcs]
                + [pl.BlockSpec((1, C_out, c), lambda b, s: (b, 0, 0))
                   for c in c_srcs]
                + [pl.BlockSpec((C_out, 1), lambda b, s: (0, 0))])
    out3 = pl.pallas_call(
        _make_gated_conv_kernel(n_src),
        out_shape=jax.ShapeDtypeStruct((B, C_out, HW_pad), dtype),
        grid=grid,
        in_specs=in_specs,
        out_specs=pl.BlockSpec((1, C_out, hw_tile), lambda b, s: (b, 0, s)),
        compiler_params=pltpu.CompilerParams(
            dimension_semantics=("parallel", "parallel"),
            vmem_limit_bytes=_vmem_limit(conv_need, capacity)),
        cost_estimate=pl.CostEstimate(
            flops=int(2 * B * C_out * C_in * HW_pad), transcendentals=0,
            bytes_accessed=int(B * (C_in + C_out) * HW_pad * itemsize)),
    )(*(x3 + w_gated + [se_b]))

    out3 = out3[:, :, :HW]
    return out3.reshape(B, C_out, H2, W2)


# ---------------------------------------------------------------------------
# Pure-JAX reference mirroring the PyTorch forward
# ---------------------------------------------------------------------------
def reference(high_features, low_features, params):
    up = _upsample_nearest_2x(high_features)
    feats = jnp.concatenate([up] + list(low_features), axis=1)
    y = jnp.mean(feats, axis=(2, 3))                                   # (B, C_in)
    h = jnp.maximum(y @ params["fc1_w"].T + params["fc1_b"], 0.0)
    z = jax.nn.sigmoid(h @ params["fc2_w"].T + params["fc2_b"])        # (B, C_in)
    gated = feats * z[:, :, None, None]
    out = jnp.einsum("oc,bchw->bohw", params["se_w"], gated)
    out = out + params["se_b"][None, :, None, None]
    return jnp.maximum(out, 0.0)


if __name__ == "__main__":
    # fSEModule(high_feature_channel=16, low_feature_channels=48):
    #   C_in = 64, hidden = 64 // 16 = 4, out_channel = 16.
    B = 2
    C_high, C_low1, C_low2 = 16, 32, 16
    C_in = C_high + C_low1 + C_low2
    C_hid = C_in // 16
    C_out = C_high
    H, W = 8, 8                                # upsampled spatial: 16x16, HW=256

    key = jax.random.PRNGKey(0)
    k = jax.random.split(key, 9)
    high = jax.random.normal(k[0], (B, C_high, H, W), jnp.float32)
    low1 = jax.random.normal(k[1], (B, C_low1, 2 * H, 2 * W), jnp.float32)
    low2 = jax.random.normal(k[2], (B, C_low2, 2 * H, 2 * W), jnp.float32)

    params = {
        "fc1_w": jax.random.normal(k[3], (C_hid, C_in), jnp.float32) / jnp.sqrt(C_in),
        "fc1_b": jax.random.normal(k[4], (C_hid,), jnp.float32) * 0.1,
        "fc2_w": jax.random.normal(k[5], (C_in, C_hid), jnp.float32) / jnp.sqrt(C_hid),
        "fc2_b": jax.random.normal(k[6], (C_in,), jnp.float32) * 0.1,
        "se_w": jax.random.normal(k[7], (C_out, C_in), jnp.float32) / jnp.sqrt(C_in),
        "se_b": jax.random.normal(k[8], (C_out,), jnp.float32) * 0.1,
    }

    ref = reference(high, [low1, low2], params)

    # Fused single-pass path (per-batch feature slab resident in VMEM).
    out_fused = jax.block_until_ready(
        fse_module_forward(high, [low1, low2], params, mode="fused"))
    assert out_fused.shape == (B, C_out, 2 * H, 2 * W)
    assert jnp.allclose(out_fused, ref, atol=1e-4, rtol=1e-4), float(
        jnp.max(jnp.abs(out_fused - ref)))

    # Tiled two-pass fallback path (exercises lane-dense 128-wide spatial tiles).
    out_tiled = jax.block_until_ready(
        fse_module_forward(high, [low1, low2], params, mode="tiled", hw_tile=128))
    assert jnp.allclose(out_tiled, ref, atol=1e-4, rtol=1e-4), float(
        jnp.max(jnp.abs(out_tiled - ref)))

    print("KERNEL_OK")
</pallas_src>

<mosaic_0001>
module attributes {stable_mosaic.version = 11 : i64} {
  func.func @kernel(%arg0: i32, %arg1: memref<1x16x256xf32, #tpu.memory_space<vmem>>, %arg2: memref<1x32x256xf32, #tpu.memory_space<vmem>>, %arg3: memref<1x16x256xf32, #tpu.memory_space<vmem>>, %arg4: memref<4x16xf32, #tpu.memory_space<vmem>>, %arg5: memref<4x32xf32, #tpu.memory_space<vmem>>, %arg6: memref<4x16xf32, #tpu.memory_space<vmem>>, %arg7: memref<4x1xf32, #tpu.memory_space<vmem>>, %arg8: memref<16x4xf32, #tpu.memory_space<vmem>>, %arg9: memref<32x4xf32, #tpu.memory_space<vmem>>, %arg10: memref<16x4xf32, #tpu.memory_space<vmem>>, %arg11: memref<16x1xf32, #tpu.memory_space<vmem>>, %arg12: memref<32x1xf32, #tpu.memory_space<vmem>>, %arg13: memref<16x1xf32, #tpu.memory_space<vmem>>, %arg14: memref<16x16xf32, #tpu.memory_space<vmem>>, %arg15: memref<16x32xf32, #tpu.memory_space<vmem>>, %arg16: memref<16x16xf32, #tpu.memory_space<vmem>>, %arg17: memref<16x1xf32, #tpu.memory_space<vmem>>, %arg18: memref<1x16x256xf32, #tpu.memory_space<vmem>>) attributes {dimension_semantics = [#tpu.dimension_semantics<parallel>], iteration_bounds = array<i64: 2>, scalar_prefetch = 0 : i64, scratch_operands = 0 : i64, tpu.core_type = #tpu.core_type<tc>, window_params = [{transform_indices = @transform_0, window_bounds = array<i64: 1, 16, 256>}, {transform_indices = @transform_1, window_bounds = array<i64: 1, 32, 256>}, {transform_indices = @transform_2, window_bounds = array<i64: 1, 16, 256>}, {pipeline_mode = #tpu.pipeline_mode<synchronous>, transform_indices = @transform_3, window_bounds = array<i64: 4, 16>}, {pipeline_mode = #tpu.pipeline_mode<synchronous>, transform_indices = @transform_4, window_bounds = array<i64: 4, 32>}, {pipeline_mode = #tpu.pipeline_mode<synchronous>, transform_indices = @transform_5, window_bounds = array<i64: 4, 16>}, {pipeline_mode = #tpu.pipeline_mode<synchronous>, transform_indices = @transform_6, window_bounds = array<i64: 4, 1>}, {pipeline_mode = #tpu.pipeline_mode<synchronous>, transform_indices = @transform_7, window_bounds = array<i64: 16, 4>}, {pipeline_mode = #tpu.pipeline_mode<synchronous>, transform_indices = @transform_8, window_bounds = array<i64: 32, 4>}, {pipeline_mode = #tpu.pipeline_mode<synchronous>, transform_indices = @transform_9, window_bounds = array<i64: 16, 4>}, {pipeline_mode = #tpu.pipeline_mode<synchronous>, transform_indices = @transform_10, window_bounds = array<i64: 16, 1>}, {pipeline_mode = #tpu.pipeline_mode<synchronous>, transform_indices = @transform_11, window_bounds = array<i64: 32, 1>}, {pipeline_mode = #tpu.pipeline_mode<synchronous>, transform_indices = @transform_12, window_bounds = array<i64: 16, 1>}, {pipeline_mode = #tpu.pipeline_mode<synchronous>, transform_indices = @transform_13, window_bounds = array<i64: 16, 16>}, {pipeline_mode = #tpu.pipeline_mode<synchronous>, transform_indices = @transform_14, window_bounds = array<i64: 16, 32>}, {pipeline_mode = #tpu.pipeline_mode<synchronous>, transform_indices = @transform_15, window_bounds = array<i64: 16, 16>}, {pipeline_mode = #tpu.pipeline_mode<synchronous>, transform_indices = @transform_16, window_bounds = array<i64: 16, 1>}, {transform_indices = @transform_17, window_bounds = array<i64: 1, 16, 256>}]} {
    %c0 = arith.constant 0 : index
    %c0_0 = arith.constant 0 : index
    %0 = vector.load %arg7[%c0, %c0_0] : memref<4x1xf32, #tpu.memory_space<vmem>>, vector<4x1xf32>
    %c0_1 = arith.constant 0 : index
    %c0_2 = arith.constant 0 : index
    %c0_3 = arith.constant 0 : index
    %1 = vector.load %arg1[%c0_1, %c0_2, %c0_3] : memref<1x16x256xf32, #tpu.memory_space<vmem>>, vector<1x16x256xf32>
    %2 = vector.shape_cast %1 : vector<1x16x256xf32> to vector<16x256xf32>
    %cst = arith.constant dense<0.000000e+00> : vector<16xf32>
    %3 = vector.multi_reduction <add>, %2, %cst [1] : vector<16x256xf32> to vector<16xf32>
    %4 = vector.shape_cast %3 : vector<16xf32> to vector<16x1xf32>
    %cst_4 = arith.constant 3.906250e-03 : f32
    %5 = vector.broadcast %cst_4 : f32 to vector<16x1xf32>
    %6 = arith.mulf %4, %5 : vector<16x1xf32>
    %c0_5 = arith.constant 0 : index
    %c0_6 = arith.constant 0 : index
    %7 = vector.load %arg4[%c0_5, %c0_6] : memref<4x16xf32, #tpu.memory_space<vmem>>, vector<4x16xf32>
    %cst_7 = arith.constant dense<0.000000e+00> : vector<4x1xf32>
    %8 = tpu.matmul %7, %6, %cst_7 {dimension_numbers = #tpu.dot_dimension_numbers<[1], [0], [0], [1], [0, 0, 1, 1], [], []>} : vector<4x16xf32>, vector<16x1xf32>, vector<4x1xf32> -> vector<4x1xf32>
    %9 = arith.addf %0, %8 : vector<4x1xf32>
    %c0_8 = arith.constant 0 : index
    %c0_9 = arith.constant 0 : index
    %c0_10 = arith.constant 0 : index
    %10 = vector.load %arg2[%c0_8, %c0_9, %c0_10] : memref<1x32x256xf32, #tpu.memory_space<vmem>>, vector<1x32x256xf32>
    %11 = vector.shape_cast %10 : vector<1x32x256xf32> to vector<32x256xf32>
    %cst_11 = arith.constant dense<0.000000e+00> : vector<32xf32>
    %12 = vector.multi_reduction <add>, %11, %cst_11 [1] : vector<32x256xf32> to vector<32xf32>
    %13 = vector.shape_cast %12 : vector<32xf32> to vector<32x1xf32>
    %cst_12 = arith.constant 3.906250e-03 : f32
    %14 = vector.broadcast %cst_12 : f32 to vector<32x1xf32>
    %15 = arith.mulf %13, %14 : vector<32x1xf32>
    %c0_13 = arith.constant 0 : index
    %c0_14 = arith.constant 0 : index
    %16 = vector.load %arg5[%c0_13, %c0_14] : memref<4x32xf32, #tpu.memory_space<vmem>>, vector<4x32xf32>
    %cst_15 = arith.constant dense<0.000000e+00> : vector<4x1xf32>
    %17 = tpu.matmul %16, %15, %cst_15 {dimension_numbers = #tpu.dot_dimension_numbers<[1], [0], [0], [1], [0, 0, 1, 1], [], []>} : vector<4x32xf32>, vector<32x1xf32>, vector<4x1xf32> -> vector<4x1xf32>
    %18 = arith.addf %9, %17 : vector<4x1xf32>
    %c0_16 = arith.constant 0 : index
    %c0_17 = arith.constant 0 : index
    %c0_18 = arith.constant 0 : index
    %19 = vector.load %arg3[%c0_16, %c0_17, %c0_18] : memref<1x16x256xf32, #tpu.memory_space<vmem>>, vector<1x16x256xf32>
    %20 = vector.shape_cast %19 : vector<1x16x256xf32> to vector<16x256xf32>
    %cst_19 = arith.constant dense<0.000000e+00> : vector<16xf32>
    %21 = vector.multi_reduction <add>, %20, %cst_19 [1] : vector<16x256xf32> to vector<16xf32>
    %22 = vector.shape_cast %21 : vector<16xf32> to vector<16x1xf32>
    %cst_20 = arith.constant 3.906250e-03 : f32
    %23 = vector.broadcast %cst_20 : f32 to vector<16x1xf32>
    %24 = arith.mulf %22, %23 : vector<16x1xf32>
    %c0_21 = arith.constant 0 : index
    %c0_22 = arith.constant 0 : index
    %25 = vector.load %arg6[%c0_21, %c0_22] : memref<4x16xf32, #tpu.memory_space<vmem>>, vector<4x16xf32>
    %cst_23 = arith.constant dense<0.000000e+00> : vector<4x1xf32>
    %26 = tpu.matmul %25, %24, %cst_23 {dimension_numbers = #tpu.dot_dimension_numbers<[1], [0], [0], [1], [0, 0, 1, 1], [], []>} : vector<4x16xf32>, vector<16x1xf32>, vector<4x1xf32> -> vector<4x1xf32>
    %27 = arith.addf %18, %26 : vector<4x1xf32>
    %cst_24 = arith.constant 0.000000e+00 : f32
    %28 = vector.broadcast %cst_24 : f32 to vector<4x1xf32>
    %29 = arith.maximumf %27, %28 : vector<4x1xf32>
    %c0_25 = arith.constant 0 : index
    %c0_26 = arith.constant 0 : index
    %30 = vector.load %arg8[%c0_25, %c0_26] : memref<16x4xf32, #tpu.memory_space<vmem>>, vector<16x4xf32>
    %cst_27 = arith.constant dense<0.000000e+00> : vector<16x1xf32>
    %31 = tpu.matmul %30, %29, %cst_27 {dimension_numbers = #tpu.dot_dimension_numbers<[1], [0], [0], [1], [0, 0, 1, 1], [], []>} : vector<16x4xf32>, vector<4x1xf32>, vector<16x1xf32> -> vector<16x1xf32>
    %c0_28 = arith.constant 0 : index
    %c0_29 = arith.constant 0 : index
    %32 = vector.load %arg11[%c0_28, %c0_29] : memref<16x1xf32, #tpu.memory_space<vmem>>, vector<16x1xf32>
    %33 = arith.addf %31, %32 : vector<16x1xf32>
    %34 = arith.negf %33 : vector<16x1xf32>
    %35 = math.exp %34 : vector<16x1xf32>
    %cst_30 = arith.constant 1.000000e+00 : f32
    %36 = vector.broadcast %cst_30 : f32 to vector<16x1xf32>
    %37 = arith.addf %36, %35 : vector<16x1xf32>
    %38 = arith.divf %36, %37 : vector<16x1xf32>
    %c0_31 = arith.constant 0 : index
    %c0_32 = arith.constant 0 : index
    %c0_33 = arith.constant 0 : index
    %39 = vector.load %arg1[%c0_31, %c0_32, %c0_33] : memref<1x16x256xf32, #tpu.memory_space<vmem>>, vector<1x16x256xf32>
    %40 = vector.shape_cast %39 : vector<1x16x256xf32> to vector<16x256xf32>
    %41 = vector.broadcast %38 : vector<16x1xf32> to vector<16x256xf32>
    %42 = arith.mulf %40, %41 : vector<16x256xf32>
    %c0_34 = arith.constant 0 : index
    %c0_35 = arith.constant 0 : index
    %43 = vector.load %arg14[%c0_34, %c0_35] : memref<16x16xf32, #tpu.memory_space<vmem>>, vector<16x16xf32>
    %cst_36 = arith.constant dense<0.000000e+00> : vector<16x256xf32>
    %44 = tpu.matmul %43, %42, %cst_36 {dimension_numbers = #tpu.dot_dimension_numbers<[1], [0], [0], [1], [0, 0, 1, 1], [], []>} : vector<16x16xf32>, vector<16x256xf32>, vector<16x256xf32> -> vector<16x256xf32>
    %c0_37 = arith.constant 0 : index
    %c0_38 = arith.constant 0 : index
    %45 = vector.load %arg9[%c0_37, %c0_38] : memref<32x4xf32, #tpu.memory_space<vmem>>, vector<32x4xf32>
    %cst_39 = arith.constant dense<0.000000e+00> : vector<32x1xf32>
    %46 = tpu.matmul %45, %29, %cst_39 {dimension_numbers = #tpu.dot_dimension_numbers<[1], [0], [0], [1], [0, 0, 1, 1], [], []>} : vector<32x4xf32>, vector<4x1xf32>, vector<32x1xf32> -> vector<32x1xf32>
    %c0_40 = arith.constant 0 : index
    %c0_41 = arith.constant 0 : index
    %47 = vector.load %arg12[%c0_40, %c0_41] : memref<32x1xf32, #tpu.memory_space<vmem>>, vector<32x1xf32>
    %48 = arith.addf %46, %47 : vector<32x1xf32>
    %49 = arith.negf %48 : vector<32x1xf32>
    %50 = math.exp %49 : vector<32x1xf32>
    %cst_42 = arith.constant 1.000000e+00 : f32
    %51 = vector.broadcast %cst_42 : f32 to vector<32x1xf32>
    %52 = arith.addf %51, %50 : vector<32x1xf32>
    %53 = arith.divf %51, %52 : vector<32x1xf32>
    %c0_43 = arith.constant 0 : index
    %c0_44 = arith.constant 0 : index
    %c0_45 = arith.constant 0 : index
    %54 = vector.load %arg2[%c0_43, %c0_44, %c0_45] : memref<1x32x256xf32, #tpu.memory_space<vmem>>, vector<1x32x256xf32>
    %55 = vector.shape_cast %54 : vector<1x32x256xf32> to vector<32x256xf32>
    %56 = vector.broadcast %53 : vector<32x1xf32> to vector<32x256xf32>
    %57 = arith.mulf %55, %56 : vector<32x256xf32>
    %c0_46 = arith.constant 0 : index
    %c0_47 = arith.constant 0 : index
    %58 = vector.load %arg15[%c0_46, %c0_47] : memref<16x32xf32, #tpu.memory_space<vmem>>, vector<16x32xf32>
    %cst_48 = arith.constant dense<0.000000e+00> : vector<16x256xf32>
    %59 = tpu.matmul %58, %57, %cst_48 {dimension_numbers = #tpu.dot_dimension_numbers<[1], [0], [0], [1], [0, 0, 1, 1], [], []>} : vector<16x32xf32>, vector<32x256xf32>, vector<16x256xf32> -> vector<16x256xf32>
    %60 = arith.addf %44, %59 : vector<16x256xf32>
    %c0_49 = arith.constant 0 : index
    %c0_50 = arith.constant 0 : index
    %61 = vector.load %arg10[%c0_49, %c0_50] : memref<16x4xf32, #tpu.memory_space<vmem>>, vector<16x4xf32>
    %cst_51 = arith.constant dense<0.000000e+00> : vector<16x1xf32>
    %62 = tpu.matmul %61, %29, %cst_51 {dimension_numbers = #tpu.dot_dimension_numbers<[1], [0], [0], [1], [0, 0, 1, 1], [], []>} : vector<16x4xf32>, vector<4x1xf32>, vector<16x1xf32> -> vector<16x1xf32>
    %c0_52 = arith.constant 0 : index
    %c0_53 = arith.constant 0 : index
    %63 = vector.load %arg13[%c0_52, %c0_53] : memref<16x1xf32, #tpu.memory_space<vmem>>, vector<16x1xf32>
    %64 = arith.addf %62, %63 : vector<16x1xf32>
    %65 = arith.negf %64 : vector<16x1xf32>
    %66 = math.exp %65 : vector<16x1xf32>
    %cst_54 = arith.constant 1.000000e+00 : f32
    %67 = vector.broadcast %cst_54 : f32 to vector<16x1xf32>
    %68 = arith.addf %67, %66 : vector<16x1xf32>
    %69 = arith.divf %67, %68 : vector<16x1xf32>
    %c0_55 = arith.constant 0 : index
    %c0_56 = arith.constant 0 : index
    %c0_57 = arith.constant 0 : index
    %70 = vector.load %arg3[%c0_55, %c0_56, %c0_57] : memref<1x16x256xf32, #tpu.memory_space<vmem>>, vector<1x16x256xf32>
    %71 = vector.shape_cast %70 : vector<1x16x256xf32> to vector<16x256xf32>
    %72 = vector.broadcast %69 : vector<16x1xf32> to vector<16x256xf32>
    %73 = arith.mulf %71, %72 : vector<16x256xf32>
    %c0_58 = arith.constant 0 : index
    %c0_59 = arith.constant 0 : index
    %74 = vector.load %arg16[%c0_58, %c0_59] : memref<16x16xf32, #tpu.memory_space<vmem>>, vector<16x16xf32>
    %cst_60 = arith.constant dense<0.000000e+00> : vector<16x256xf32>
    %75 = tpu.matmul %74, %73, %cst_60 {dimension_numbers = #tpu.dot_dimension_numbers<[1], [0], [0], [1], [0, 0, 1, 1], [], []>} : vector<16x16xf32>, vector<16x256xf32>, vector<16x256xf32> -> vector<16x256xf32>
    %76 = arith.addf %60, %75 : vector<16x256xf32>
    %c0_61 = arith.constant 0 : index
    %c0_62 = arith.constant 0 : index
    %77 = vector.load %arg17[%c0_61, %c0_62] : memref<16x1xf32, #tpu.memory_space<vmem>>, vector<16x1xf32>
    %78 = vector.broadcast %77 : vector<16x1xf32> to vector<16x256xf32>
    %79 = arith.addf %76, %78 : vector<16x256xf32>
    %cst_63 = arith.constant 0.000000e+00 : f32
    %80 = vector.broadcast %cst_63 : f32 to vector<16x256xf32>
    %81 = arith.maximumf %79, %80 : vector<16x256xf32>
    %c0_64 = arith.constant 0 : index
    %c0_65 = arith.constant 0 : index
    %c0_66 = arith.constant 0 : index
    %82 = vector.load %arg18[%c0_64, %c0_65, %c0_66] : memref<1x16x256xf32, #tpu.memory_space<vmem>>, vector<1x16x256xf32>
    %83 = vector.shape_cast %82 : vector<1x16x256xf32> to vector<16x256xf32>
    %84 = vector.shape_cast %81 : vector<16x256xf32> to vector<1x16x256xf32>
    tpu.vector_store %arg18[%c0_64, %c0_65, %c0_66], %84 {strides = array<i32>} : memref<1x16x256xf32, #tpu.memory_space<vmem>>, vector<1x16x256xf32>,
    return
  }
  func.func @transform_0(%arg0: i32) -> (i32, i32, i32) {
    %c0_i32 = arith.constant 0 : i32
    %c0_i32_0 = arith.constant 0 : i32
    %c0_i32_1 = arith.constant 0 : i32
    return %arg0, %c0_i32, %c0_i32_0 : i32, i32, i32
  }
  func.func @transform_1(%arg0: i32) -> (i32, i32, i32) {
    %c0_i32 = arith.constant 0 : i32
    %c0_i32_0 = arith.constant 0 : i32
    %c0_i32_1 = arith.constant 0 : i32
    return %arg0, %c0_i32, %c0_i32_0 : i32, i32, i32
  }
  func.func @transform_2(%arg0: i32) -> (i32, i32, i32) {
    %c0_i32 = arith.constant 0 : i32
    %c0_i32_0 = arith.constant 0 : i32
    %c0_i32_1 = arith.constant 0 : i32
    return %arg0, %c0_i32, %c0_i32_0 : i32, i32, i32
  }
  func.func @transform_3(%arg0: i32) -> (i32, i32) {
    %c0_i32 = arith.constant 0 : i32
    %c0_i32_0 = arith.constant 0 : i32
    %c0_i32_1 = arith.constant 0 : i32
    return %c0_i32, %c0_i32_0 : i32, i32
  }
  func.func @transform_4(%arg0: i32) -> (i32, i32) {
    %c0_i32 = arith.constant 0 : i32
    %c0_i32_0 = arith.constant 0 : i32
    %c0_i32_1 = arith.constant 0 : i32
    return %c0_i32, %c0_i32_0 : i32, i32
  }
  func.func @transform_5(%arg0: i32) -> (i32, i32) {
    %c0_i32 = arith.constant 0 : i32
    %c0_i32_0 = arith.constant 0 : i32
    %c0_i32_1 = arith.constant 0 : i32
    return %c0_i32, %c0_i32_0 : i32, i32
  }
  func.func @transform_6(%arg0: i32) -> (i32, i32) {
    %c0_i32 = arith.constant 0 : i32
    %c0_i32_0 = arith.constant 0 : i32
    %c0_i32_1 = arith.constant 0 : i32
    return %c0_i32, %c0_i32_0 : i32, i32
  }
  func.func @transform_7(%arg0: i32) -> (i32, i32) {
    %c0_i32 = arith.constant 0 : i32
    %c0_i32_0 = arith.constant 0 : i32
    %c0_i32_1 = arith.constant 0 : i32
    return %c0_i32, %c0_i32_0 : i32, i32
  }
  func.func @transform_8(%arg0: i32) -> (i32, i32) {
    %c0_i32 = arith.constant 0 : i32
    %c0_i32_0 = arith.constant 0 : i32
    %c0_i32_1 = arith.constant 0 : i32
    return %c0_i32, %c0_i32_0 : i32, i32
  }
  func.func @transform_9(%arg0: i32) -> (i32, i32) {
    %c0_i32 = arith.constant 0 : i32
    %c0_i32_0 = arith.constant 0 : i32
    %c0_i32_1 = arith.constant 0 : i32
    return %c0_i32, %c0_i32_0 : i32, i32
  }
  func.func @transform_10(%arg0: i32) -> (i32, i32) {
    %c0_i32 = arith.constant 0 : i32
    %c0_i32_0 = arith.constant 0 : i32
    %c0_i32_1 = arith.constant 0 : i32
    return %c0_i32, %c0_i32_0 : i32, i32
  }
  func.func @transform_11(%arg0: i32) -> (i32, i32) {
    %c0_i32 = arith.constant 0 : i32
    %c0_i32_0 = arith.constant 0 : i32
    %c0_i32_1 = arith.constant 0 : i32
    return %c0_i32, %c0_i32_0 : i32, i32
  }
  func.func @transform_12(%arg0: i32) -> (i32, i32) {
    %c0_i32 = arith.constant 0 : i32
    %c0_i32_0 = arith.constant 0 : i32
    %c0_i32_1 = arith.constant 0 : i32
    return %c0_i32, %c0_i32_0 : i32, i32
  }
  func.func @transform_13(%arg0: i32) -> (i32, i32) {
    %c0_i32 = arith.constant 0 : i32
    %c0_i32_0 = arith.constant 0 : i32
    %c0_i32_1 = arith.constant 0 : i32
    return %c0_i32, %c0_i32_0 : i32, i32
  }
  func.func @transform_14(%arg0: i32) -> (i32, i32) {
    %c0_i32 = arith.constant 0 : i32
    %c0_i32_0 = arith.constant 0 : i32
    %c0_i32_1 = arith.constant 0 : i32
    return %c0_i32, %c0_i32_0 : i32, i32
  }
  func.func @transform_15(%arg0: i32) -> (i32, i32) {
    %c0_i32 = arith.constant 0 : i32
    %c0_i32_0 = arith.constant 0 : i32
    %c0_i32_1 = arith.constant 0 : i32
    return %c0_i32, %c0_i32_0 : i32, i32
  }
  func.func @transform_16(%arg0: i32) -> (i32, i32) {
    %c0_i32 = arith.constant 0 : i32
    %c0_i32_0 = arith.constant 0 : i32
    %c0_i32_1 = arith.constant 0 : i32
    return %c0_i32, %c0_i32_0 : i32, i32
  }
  func.func @transform_17(%arg0: i32) -> (i32, i32, i32) {
    %c0_i32 = arith.constant 0 : i32
    %c0_i32_0 = arith.constant 0 : i32
    %c0_i32_1 = arith.constant 0 : i32
    return %arg0, %c0_i32, %c0_i32_0 : i32, i32, i32
  }
}

</mosaic_0001>

<llo_original>
// kernel: tpu_custom_call.1
$region0: #{tpu_custom_call.1}
  #allocation0 [shape = 'u32[]', space=smem, size = 0x4, offset = 0x4, fixed_abs, tag = 'smem constant byte address 0x4 - core index']
  #allocation1 [shape = 'u32[72,128]{1,0:T(1,128)}', space=vmem, size = 0x9000, scoped, tag = 'internal scratch']
  %s0 = inlined_call_operand.hbm [shape: f32[2,16,256], index: 0, kind: input, shape index: {}]
  %s1 = inlined_call_operand.vmem [shape: f32[2,32,256], index: 1, kind: input, shape index: {}]
  %s2 = inlined_call_operand.hbm [shape: f32[2,16,256], index: 2, kind: input, shape index: {}]
  %s3 = inlined_call_operand.hbm [shape: f32[4,16], index: 3, kind: input, shape index: {}]
  %s4 = inlined_call_operand.hbm [shape: f32[4,32], index: 4, kind: input, shape index: {}]
  %s5 = inlined_call_operand.hbm [shape: f32[4,16], index: 5, kind: input, shape index: {}]
  %s6 = inlined_call_operand.vmem [shape: f32[4,1], index: 6, kind: input, shape index: {}]
  %s7 = inlined_call_operand.vmem [shape: f32[16,4], index: 7, kind: input, shape index: {}]
  %s8 = inlined_call_operand.vmem [shape: f32[32,4], index: 8, kind: input, shape index: {}]
  %s9 = inlined_call_operand.vmem [shape: f32[16,4], index: 9, kind: input, shape index: {}]
  %s10 = inlined_call_operand.vmem [shape: f32[16,1], index: 10, kind: input, shape index: {}]
  %s11 = inlined_call_operand.vmem [shape: f32[32,1], index: 11, kind: input, shape index: {}]
  %s12 = inlined_call_operand.vmem [shape: f32[16,1], index: 12, kind: input, shape index: {}]
  %s13 = inlined_call_operand.vmem [shape: f32[16,16], index: 13, kind: input, shape index: {}]
  %s14 = inlined_call_operand.vmem [shape: f32[16,32], index: 14, kind: input, shape index: {}]
  %s15 = inlined_call_operand.vmem [shape: f32[16,16], index: 15, kind: input, shape index: {}]
  %s16 = inlined_call_operand.vmem [shape: f32[16,1], index: 16, kind: input, shape index: {}]
  %s17 = inlined_call_operand.hbm [shape: f32[2,16,256], index: 17, kind: output, shape index: {}]
  %s18 = sld [smem:[#allocation0]]
  $region121: #{tpu_custom_call.1} parent=0
    _
  %s20 = ssub.s32 1, %s18
  %s21 = scalar_select 0, %s20, %s18
  $region1: #{tpu_custom_call.1} parent=0
    #allocation2 [shape = 'u8[32768]{0}', space=vmem, size = 0x8000, scoped, tag = 'input window, operand 0']
    #allocation3 [shape = 's32[2]{0}', space=sflag, size = 0x8, scoped, tag = 'scoped memory for tpu_custom_call.1']
    #allocation4 [shape = 's32[2]{0}', space=sflag, size = 0x8, scoped, tag = 'scoped memory for tpu_custom_call.1']
    #allocation5 [shape = 'u8[32768]{0}', space=vmem, size = 0x8000, scoped, tag = 'input window, operand 2']
    #allocation6 [shape = 's32[2]{0}', space=sflag, size = 0x8, scoped, tag = 'scoped memory for tpu_custom_call.1']
    #allocation7 [shape = 'u8[2048]{0}', space=vmem, size = 0x800, scoped, tag = 'input window, operand 3, single buffered']
    #allocation8 [shape = 'u8[2048]{0}', space=vmem, size = 0x800, scoped, tag = 'input window, operand 4, single buffered']
    #allocation9 [shape = 's32[1]{0}', space=sflag, size = 0x4, scoped, tag = 'scoped memory for tpu_custom_call.1']
    #allocation10 [shape = 'u8[2048]{0}', space=vmem, size = 0x800, scoped, tag = 'input window, operand 5, single buffered']
    #allocation11 [shape = 'u8[32768]{0}', space=vmem, size = 0x8000, scoped, tag = 'output window, operand 0']
    %22 = vsyncpa [#allocation3], 0
    %s23 = scalar_lea.sflag [#allocation3], 1
    %24 = vsyncpa %s23, 0
    %25 = vsyncpa [#allocation6], 0
    %s26 = scalar_lea.sflag [#allocation6], 1
    %27 = vsyncpa %s26, 0
    %28 = vsyncpa [#allocation9], 0
    %29 = vsyncpa [#allocation4], 0
    %s30 = scalar_lea.sflag [#allocation4], 1
    %31 = vsyncpa %s30, 0
    loop: start=0, step=1, limit=4
    $region2: #{tpu_custom_call.1} parent=1 // loop_pre_header
      _
    $region3: #{tpu_custom_call.1} parent=1 // loop_header
      %s33 = sphi 0, %s37
      %p34 = scmp.ge.s32.totalorder %s33, 4
      %s43 = sphi 0, %s45
      %s46 = sphi 0, %s43
      %s47 = sphi 0, %s46
      %s63 = sphi 0, %s47
      %s69 = sphi 0, %s71
      %s72 = sphi 0, %s69
      %s73 = sphi 0, %s72
      %s89 = sphi 0, %s73
      %s95 = sphi 0, %s97
      %s98 = sphi 0, %s95
      %s99 = sphi 0, %s98
      %s115 = sphi 0, %s99
      %s119 = sphi 0, %s119
      %s121 = sphi 0, %s119
      %s122 = sphi 0, %s121
      %s136 = sphi 0, %s122
      %s140 = sphi 0, %s140
      %s142 = sphi 0, %s140
      %s143 = sphi 0, %s142
      %s157 = sphi 0, %s143
      %s161 = sphi 0, %s161
      %s163 = sphi 0, %s161
      %s164 = sphi 0, %s163
      %s178 = sphi 0, %s164
      %s182 = sphi 0, %s182
      %s184 = sphi 0, %s182
      %s185 = sphi 0, %s184
      %s199 = sphi 0, %s185
      %s203 = sphi 0, %s203
      %s205 = sphi 0, %s203
      %s206 = sphi 0, %s205
      %s220 = sphi 0, %s206
      %s224 = sphi 0, %s224
      %s226 = sphi 0, %s224
      %s227 = sphi 0, %s226
      %s241 = sphi 0, %s227
      %s245 = sphi 0, %s245
      %s247 = sphi 0, %s245
      %s248 = sphi 0, %s247
      %s262 = sphi 0, %s248
      %s266 = sphi 0, %s266
      %s268 = sphi 0, %s266
      %s269 = sphi 0, %s268
      %s283 = sphi 0, %s269
      %s287 = sphi 0, %s287
      %s289 = sphi 0, %s287
      %s290 = sphi 0, %s289
      %s304 = sphi 0, %s290
      %s308 = sphi 0, %s308
      %s310 = sphi 0, %s308
      %s311 = sphi 0, %s310
      %s325 = sphi 0, %s311
      %s329 = sphi 0, %s329
      %s331 = sphi 0, %s329
      %s332 = sphi 0, %s331
      %s346 = sphi 0, %s332
      %s350 = sphi 0, %s350
      %s352 = sphi 0, %s350
      %s353 = sphi 0, %s352
      %s367 = sphi 0, %s353
      %s371 = sphi 0, %s371
      %s373 = sphi 0, %s371
      %s374 = sphi 0, %s373
      %s388 = sphi 0, %s374
      %s392 = sphi 0, %s392
      %s394 = sphi 0, %s392
      %s395 = sphi 0, %s394
      %s409 = sphi 0, %s395
      %s415 = sphi 0, %s417
      %s418 = sphi 0, %s415
      %s419 = sphi 0, %s418
      %s435 = sphi 0, %s419
    $region4: #{tpu_custom_call.1} parent=1 // loop_header_branch
      %36 = sbr.rel (%p34) target = $region8
    $region5: #{tpu_custom_call.1} parent=1 // loop_body
      %s38 = ssub.s32 %s33, 1
      %s39 = ssub.s32 %s33, 2
      %s40 = sadd.s32 %s33, 1
      %s41 = ssub.s32 %s33, %s40
      %p42 = scmp.eq.s32.totalorder %s41, 0
      %s44 = sadd.s32 %s43, 1
      %s45 = scalar_select %p42, %s43, %s44
      %p48 = pneg %p42
      %p49 = scmp.eq.s32.totalorder %s33, 1
      %p50 = por %p48, %p49
      %p51 = scmp.ne.s32.totalorder %s43, %s46
      %p52 = scmp.eq.s32.totalorder %s33, 0
      %p53 = por %p51, %p52
      %p54 = scmp.ne.s32.totalorder %s43, %s46
      %p55 = scmp.eq.s32.totalorder %s38, 1
      %p56 = por %p54, %p55
      %p57 = scmp.ne.s32.totalorder %s46, %s47
      %p58 = scmp.eq.s32.totalorder %s38, 0
      %p59 = por %p57, %p58
      %p60 = scmp.ne.s32.totalorder %s46, %s47
      %p61 = scmp.eq.s32.totalorder %s39, 1
      %p62 = por %p60, %p61
      %p64 = scmp.ne.s32.totalorder %s47, %s63
      %p65 = scmp.eq.s32.totalorder %s39, 0
      %p66 = por %p64, %p65
      %s67 = ssub.s32 %s33, %s40
      %p68 = scmp.eq.s32.totalorder %s67, 0
      %s70 = sadd.s32 %s69, 1
      %s71 = scalar_select %p68, %s69, %s70
      %p74 = pneg %p68
      %p75 = scmp.eq.s32.totalorder %s33, 1
      %p76 = por %p74, %p75
      %p77 = scmp.ne.s32.totalorder %s69, %s72
      %p78 = scmp.eq.s32.totalorder %s33, 0
      %p79 = por %p77, %p78
      %p80 = scmp.ne.s32.totalorder %s69, %s72
      %p81 = scmp.eq.s32.totalorder %s38, 1
      %p82 = por %p80, %p81
      %p83 = scmp.ne.s32.totalorder %s72, %s73
      %p84 = scmp.eq.s32.totalorder %s38, 0
      %p85 = por %p83, %p84
      %p86 = scmp.ne.s32.totalorder %s72, %s73
      %p87 = scmp.eq.s32.totalorder %s39, 1
      %p88 = por %p86, %p87
      %p90 = scmp.ne.s32.totalorder %s73, %s89
      %p91 = scmp.eq.s32.totalorder %s39, 0
      %p92 = por %p90, %p91
      %s93 = ssub.s32 %s33, %s40
      %p94 = scmp.eq.s32.totalorder %s93, 0
      %s96 = sadd.s32 %s95, 1
      %s97 = scalar_select %p94, %s95, %s96
      %p100 = pneg %p94
      %p101 = scmp.eq.s32.totalorder %s33, 1
      %p102 = por %p100, %p101
      %p103 = scmp.ne.s32.totalorder %s95, %s98
      %p104 = scmp.eq.s32.totalorder %s33, 0
      %p105 = por %p103, %p104
      %p106 = scmp.ne.s32.totalorder %s95, %s98
      %p107 = scmp.eq.s32.totalorder %s38, 1
      %p108 = por %p106, %p107
      %p109 = scmp.ne.s32.totalorder %s98, %s99
      %p110 = scmp.eq.s32.totalorder %s38, 0
      %p111 = por %p109, %p110
      %p112 = scmp.ne.s32.totalorder %s98, %s99
      %p113 = scmp.eq.s32.totalorder %s39, 1
      %p114 = por %p112, %p113
      %p116 = scmp.ne.s32.totalorder %s99, %s115
      %p117 = scmp.eq.s32.totalorder %s39, 0
      %p118 = por %p116, %p117
      %s120 = sadd.s32 %s119, 1
      %p123 = scmp.eq.s32.totalorder %s33, 1
      %p124 = scmp.ne.s32.totalorder %s119, %s121
      %p125 = scmp.eq.s32.totalorder %s33, 0
      %p126 = por %p124, %p125
      %p127 = scmp.ne.s32.totalorder %s119, %s121
      %p128 = scmp.eq.s32.totalorder %s38, 1
      %p129 = por %p127, %p128
      %p130 = scmp.ne.s32.totalorder %s121, %s122
      %p131 = scmp.eq.s32.totalorder %s38, 0
      %p132 = por %p130, %p131
      %p133 = scmp.ne.s32.totalorder %s121, %s122
      %p134 = scmp.eq.s32.totalorder %s39, 1
      %p135 = por %p133, %p134
      %p137 = scmp.ne.s32.totalorder %s122, %s136
      %p138 = scmp.eq.s32.totalorder %s39, 0
      %p139 = por %p137, %p138
      %s141 = sadd.s32 %s140, 1
      %p144 = scmp.eq.s32.totalorder %s33, 1
      %p145 = scmp.ne.s32.totalorder %s140, %s142
      %p146 = scmp.eq.s32.totalorder %s33, 0
      %p147 = por %p145, %p146
      %p148 = scmp.ne.s32.totalorder %s140, %s142
      %p149 = scmp.eq.s32.totalorder %s38, 1
      %p150 = por %p148, %p149
      %p151 = scmp.ne.s32.totalorder %s142, %s143
      %p152 = scmp.eq.s32.totalorder %s38, 0
      %p153 = por %p151, %p152
      %p154 = scmp.ne.s32.totalorder %s142, %s143
      %p155 = scmp.eq.s32.totalorder %s39, 1
      %p156 = por %p154, %p155
      %p158 = scmp.ne.s32.totalorder %s143, %s157
      %p159 = scmp.eq.s32.totalorder %s39, 0
      %p160 = por %p158, %p159
      %s162 = sadd.s32 %s161, 1
      %p165 = scmp.eq.s32.totalorder %s33, 1
      %p166 = scmp.ne.s32.totalorder %s161, %s163
      %p167 = scmp.eq.s32.totalorder %s33, 0
      %p168 = por %p166, %p167
      %p169 = scmp.ne.s32.totalorder %s161, %s163
      %p170 = scmp.eq.s32.totalorder %s38, 1
      %p171 = por %p169, %p170
      %p172 = scmp.ne.s32.totalorder %s163, %s164
      %p173 = scmp.eq.s32.totalorder %s38, 0
      %p174 = por %p172, %p173
      %p175 = scmp.ne.s32.totalorder %s163, %s164
      %p176 = scmp.eq.s32.totalorder %s39, 1
      %p177 = por %p175, %p176
      %p179 = scmp.ne.s32.totalorder %s164, %s178
      %p180 = scmp.eq.s32.totalorder %s39, 0
      %p181 = por %p179, %p180
      %s183 = sadd.s32 %s182, 1
      %p186 = scmp.eq.s32.totalorder %s33, 1
      %p187 = scmp.ne.s32.totalorder %s182, %s184
      %p188 = scmp.eq.s32.totalorder %s33, 0
      %p189 = por %p187, %p188
      %p190 = scmp.ne.s32.totalorder %s182, %s184
      %p191 = scmp.eq.s32.totalorder %s38, 1
      %p192 = por %p190, %p191
      %p193 = scmp.ne.s32.totalorder %s184, %s185
      %p194 = scmp.eq.s32.totalorder %s38, 0
      %p195 = por %p193, %p194
      %p196 = scmp.ne.s32.totalorder %s184, %s185
      %p197 = scmp.eq.s32.totalorder %s39, 1
      %p198 = por %p196, %p197
      %p200 = scmp.ne.s32.totalorder %s185, %s199
      %p201 = scmp.eq.s32.totalorder %s39, 0
      %p202 = por %p200, %p201
      %s204 = sadd.s32 %s203, 1
      %p207 = scmp.eq.s32.totalorder %s33, 1
      %p208 = scmp.ne.s32.totalorder %s203, %s205
      %p209 = scmp.eq.s32.totalorder %s33, 0
      %p210 = por %p208, %p209
      %p211 = scmp.ne.s32.totalorder %s203, %s205
      %p212 = scmp.eq.s32.totalorder %s38, 1
      %p213 = por %p211, %p212
      %p214 = scmp.ne.s32.totalorder %s205, %s206
      %p215 = scmp.eq.s32.totalorder %s38, 0
      %p216 = por %p214, %p215
      %p217 = scmp.ne.s32.totalorder %s205, %s206
      %p218 = scmp.eq.s32.totalorder %s39, 1
      %p219 = por %p217, %p218
      %p221 = scmp.ne.s32.totalorder %s206, %s220
      %p222 = scmp.eq.s32.totalorder %s39, 0
      %p223 = por %p221, %p222
      %s225 = sadd.s32 %s224, 1
      %p228 = scmp.eq.s32.totalorder %s33, 1
      %p229 = scmp.ne.s32.totalorder %s224, %s226
      %p230 = scmp.eq.s32.totalorder %s33, 0
      %p231 = por %p229, %p230
      %p232 = scmp.ne.s32.totalorder %s224, %s226
      %p233 = scmp.eq.s32.totalorder %s38, 1
      %p234 = por %p232, %p233
      %p235 = scmp.ne.s32.totalorder %s226, %s227
      %p236 = scmp.eq.s32.totalorder %s38, 0
      %p237 = por %p235, %p236
      %p238 = scmp.ne.s32.totalorder %s226, %s227
      %p239 = scmp.eq.s32.totalorder %s39, 1
      %p240 = por %p238, %p239
      %p242 = scmp.ne.s32.totalorder %s227, %s241
      %p243 = scmp.eq.s32.totalorder %s39, 0
      %p244 = por %p242, %p243
      %s246 = sadd.s32 %s245, 1
      %p249 = scmp.eq.s32.totalorder %s33, 1
      %p250 = scmp.ne.s32.totalorder %s245, %s247
      %p251 = scmp.eq.s32.totalorder %s33, 0
      %p252 = por %p250, %p251
      %p253 = scmp.ne.s32.totalorder %s245, %s247
      %p254 = scmp.eq.s32.totalorder %s38, 1
      %p255 = por %p253, %p254
      %p256 = scmp.ne.s32.totalorder %s247, %s248
      %p257 = scmp.eq.s32.totalorder %s38, 0
      %p258 = por %p256, %p257
      %p259 = scmp.ne.s32.totalorder %s247, %s248
      %p260 = scmp.eq.s32.totalorder %s39, 1
      %p261 = por %p259, %p260
      %p263 = scmp.ne.s32.totalorder %s248, %s262
      %p264 = scmp.eq.s32.totalorder %s39, 0
      %p265 = por %p263, %p264
      %s267 = sadd.s32 %s266, 1
      %p270 = scmp.eq.s32.totalorder %s33, 1
      %p271 = scmp.ne.s32.totalorder %s266, %s268
      %p272 = scmp.eq.s32.totalorder %s33, 0
      %p273 = por %p271, %p272
      %p274 = scmp.ne.s32.totalorder %s266, %s268
      %p275 = scmp.eq.s32.totalorder %s38, 1
      %p276 = por %p274, %p275
      %p277 = scmp.ne.s32.totalorder %s268, %s269
      %p278 = scmp.eq.s32.totalorder %s38, 0
      %p279 = por %p277, %p278
      %p280 = scmp.ne.s32.totalorder %s268, %s269
      %p281 = scmp.eq.s32.totalorder %s39, 1
      %p282 = por %p280, %p281
      %p284 = scmp.ne.s32.totalorder %s269, %s283
      %p285 = scmp.eq.s32.totalorder %s39, 0
      %p286 = por %p284, %p285
      %s288 = sadd.s32 %s287, 1
      %p291 = scmp.eq.s32.totalorder %s33, 1
      %p292 = scmp.ne.s32.totalorder %s287, %s289
      %p293 = scmp.eq.s32.totalorder %s33, 0
      %p294 = por %p292, %p293
      %p295 = scmp.ne.s32.totalorder %s287, %s289
      %p296 = scmp.eq.s32.totalorder %s38, 1
      %p297 = por %p295, %p296
      %p298 = scmp.ne.s32.totalorder %s289, %s290
      %p299 = scmp.eq.s32.totalorder %s38, 0
      %p300 = por %p298, %p299
      %p301 = scmp.ne.s32.totalorder %s289, %s290
      %p302 = scmp.eq.s32.totalorder %s39, 1
      %p303 = por %p301, %p302
      %p305 = scmp.ne.s32.totalorder %s290, %s304
      %p306 = scmp.eq.s32.totalorder %s39, 0
      %p307 = por %p305, %p306
      %s309 = sadd.s32 %s308, 1
      %p312 = scmp.eq.s32.totalorder %s33, 1
      %p313 = scmp.ne.s32.totalorder %s308, %s310
      %p314 = scmp.eq.s32.totalorder %s33, 0
      %p315 = por %p313, %p314
      %p316 = scmp.ne.s32.totalorder %s308, %s310
      %p317 = scmp.eq.s32.totalorder %s38, 1
      %p318 = por %p316, %p317
      %p319 = scmp.ne.s32.totalorder %s310, %s311
      %p320 = scmp.eq.s32.totalorder %s38, 0
      %p321 = por %p319, %p320
      %p322 = scmp.ne.s32.totalorder %s310, %s311
      %p323 = scmp.eq.s32.totalorder %s39, 1
      %p324 = por %p322, %p323
      %p326 = scmp.ne.s32.totalorder %s311, %s325
      %p327 = scmp.eq.s32.totalorder %s39, 0
      %p328 = por %p326, %p327
      %s330 = sadd.s32 %s329, 1
      %p333 = scmp.eq.s32.totalorder %s33, 1
      %p334 = scmp.ne.s32.totalorder %s329, %s331
      %p335 = scmp.eq.s32.totalorder %s33, 0
      %p336 = por %p334, %p335
      %p337 = scmp.ne.s32.totalorder %s329, %s331
      %p338 = scmp.eq.s32.totalorder %s38, 1
      %p339 = por %p337, %p338
      %p340 = scmp.ne.s32.totalorder %s331, %s332
      %p341 = scmp.eq.s32.totalorder %s38, 0
      %p342 = por %p340, %p341
      %p343 = scmp.ne.s32.totalorder %s331, %s332
      %p344 = scmp.eq.s32.totalorder %s39, 1
      %p345 = por %p343, %p344
      %p347 = scmp.ne.s32.totalorder %s332, %s346
      %p348 = scmp.eq.s32.totalorder %s39, 0
      %p349 = por %p347, %p348
      %s351 = sadd.s32 %s350, 1
      %p354 = scmp.eq.s32.totalorder %s33, 1
      %p355 = scmp.ne.s32.totalorder %s350, %s352
      %p356 = scmp.eq.s32.totalorder %s33, 0
      %p357 = por %p355, %p356
      %p358 = scmp.ne.s32.totalorder %s350, %s352
      %p359 = scmp.eq.s32.totalorder %s38, 1
      %p360 = por %p358, %p359
      %p361 = scmp.ne.s32.totalorder %s352, %s353
      %p362 = scmp.eq.s32.totalorder %s38, 0
      %p363 = por %p361, %p362
      %p364 = scmp.ne.s32.totalorder %s352, %s353
      %p365 = scmp.eq.s32.totalorder %s39, 1
      %p366 = por %p364, %p365
      %p368 = scmp.ne.s32.totalorder %s353, %s367
      %p369 = scmp.eq.s32.totalorder %s39, 0
      %p370 = por %p368, %p369
      %s372 = sadd.s32 %s371, 1
      %p375 = scmp.eq.s32.totalorder %s33, 1
      %p376 = scmp.ne.s32.totalorder %s371, %s373
      %p377 = scmp.eq.s32.totalorder %s33, 0
      %p378 = por %p376, %p377
      %p379 = scmp.ne.s32.totalorder %s371, %s373
      %p380 = scmp.eq.s32.totalorder %s38, 1
      %p381 = por %p379, %p380
      %p382 = scmp.ne.s32.totalorder %s373, %s374
      %p383 = scmp.eq.s32.totalorder %s38, 0
      %p384 = por %p382, %p383
      %p385 = scmp.ne.s32.totalorder %s373, %s374
      %p386 = scmp.eq.s32.totalorder %s39, 1
      %p387 = por %p385, %p386
      %p389 = scmp.ne.s32.totalorder %s374, %s388
      %p390 = scmp.eq.s32.totalorder %s39, 0
      %p391 = por %p389, %p390
      %s393 = sadd.s32 %s392, 1
      %p396 = scmp.eq.s32.totalorder %s33, 1
      %p397 = scmp.ne.s32.totalorder %s392, %s394
      %p398 = scmp.eq.s32.totalorder %s33, 0
      %p399 = por %p397, %p398
      %p400 = scmp.ne.s32.totalorder %s392, %s394
      %p401 = scmp.eq.s32.totalorder %s38, 1
      %p402 = por %p400, %p401
      %p403 = scmp.ne.s32.totalorder %s394, %s395
      %p404 = scmp.eq.s32.totalorder %s38, 0
      %p405 = por %p403, %p404
      %p406 = scmp.ne.s32.totalorder %s394, %s395
      %p407 = scmp.eq.s32.totalorder %s39, 1
      %p408 = por %p406, %p407
      %p410 = scmp.ne.s32.totalorder %s395, %s409
      %p411 = scmp.eq.s32.totalorder %s39, 0
      %p412 = por %p410, %p411
      %s413 = ssub.s32 %s33, %s40
      %p414 = scmp.eq.s32.totalorder %s413, 0
      %s416 = sadd.s32 %s415, 1
      %s417 = scalar_select %p414, %s415, %s416
      %p420 = pneg %p414
      %p421 = scmp.eq.s32.totalorder %s33, 1
      %p422 = por %p420, %p421
      %p423 = scmp.ne.s32.totalorder %s415, %s418
      %p424 = scmp.eq.s32.totalorder %s33, 0
      %p425 = por %p423, %p424
      %p426 = scmp.ne.s32.totalorder %s415, %s418
      %p427 = scmp.eq.s32.totalorder %s38, 1
      %p428 = por %p426, %p427
      %p429 = scmp.ne.s32.totalorder %s418, %s419
      %p430 = scmp.eq.s32.totalorder %s38, 0
      %p431 = por %p429, %p430
      %p432 = scmp.ne.s32.totalorder %s418, %s419
      %p433 = scmp.eq.s32.totalorder %s39, 1
      %p434 = por %p432, %p433
      %p436 = scmp.ne.s32.totalorder %s419, %s435
      %p437 = scmp.eq.s32.totalorder %s39, 0
      %p438 = por %p436, %p437
      %p439 = scmp.le.s32.totalorder 1, %s33
      %p440 = scmp.lt.s32.totalorder %s33, 3
      %p441 = pnand %p439, %p440
      %p442 = pneg %p441
      // Predicated region
      $region9: #{tpu_custom_call.1} parent=5 // pred_check
        _
      $region10: #{tpu_custom_call.1} parent=5 // pred_check_branch
        %444 = sbr.rel (%p441) target = $region12
      $region11: #{tpu_custom_call.1} parent=5 // pred_region
        %s445 = ssub.s32 %s33, 1
        // Predicated region
        $region13: #{tpu_custom_call.1} parent=11 // pred_check
          %p446 = pneg %p132
        $region14: #{tpu_custom_call.1} parent=11 // pred_check_branch
          %448 = sbr.rel (%p446) target = $region16
        $region15: #{tpu_custom_call.1} parent=11 // pred_region
          %450 = vsyncadd [#allocation6], 0
          %s452 = sshll.u32 %s3, 4
          %s453 = int_to_ptr.hbm [resolvable:$true] %s452
          %s454 = sshll.u32 [#allocation7], 4
          %s455 = int_to_ptr.vmem [resolvable:$true] %s454
          %457 = dma.hbm_to_vmem [thread:$0]  %s453, 64, %s455, [#allocation6]
        $region16: #{tpu_custom_call.1} parent=11 // pred_fallthru
          _
        // Predicated region
        $region17: #{tpu_custom_call.1} parent=11 // pred_check
          %p458 = pneg %p153
        $region18: #{tpu_custom_call.1} parent=11 // pred_check_branch
          %460 = sbr.rel (%p458) target = $region20
        $region19: #{tpu_custom_call.1} parent=11 // pred_region
          %462 = vsyncadd [#allocation9], 0
          %s464 = sshll.u32 %s4, 4
          %s465 = int_to_ptr.hbm [resolvable:$true] %s464
          %s466 = sshll.u32 [#allocation8], 4
          %s467 = int_to_ptr.vmem [resolvable:$true] %s466
          %469 = dma.hbm_to_vmem [thread:$0]  %s465, 64, %s467, [#allocation9]
        $region20: #{tpu_custom_call.1} parent=11 // pred_fallthru
          _
        // Predicated region
        $region21: #{tpu_custom_call.1} parent=11 // pred_check
          %p470 = pneg %p174
        $region22: #{tpu_custom_call.1} parent=11 // pred_check_branch
          %472 = sbr.rel (%p470) target = $region24
        $region23: #{tpu_custom_call.1} parent=11 // pred_region
          %474 = vsyncadd [#allocation9], 0
          %s476 = sshll.u32 %s5, 4
          %s477 = int_to_ptr.hbm [resolvable:$true] %s476
          %s478 = sshll.u32 [#allocation10], 4
          %s479 = int_to_ptr.vmem [resolvable:$true] %s478
          %481 = dma.hbm_to_vmem [thread:$0]  %s477, 64, %s479, [#allocation9]
        $region24: #{tpu_custom_call.1} parent=11 // pred_fallthru
          _
        // Predicated region
        $region25: #{tpu_custom_call.1} parent=11 // pred_check
          %p482 = pneg %p195
        $region26: #{tpu_custom_call.1} parent=11 // pred_check_branch
          %484 = sbr.rel (%p482) target = $region28
        $region27: #{tpu_custom_call.1} parent=11 // pred_region
          _
        $region28: #{tpu_custom_call.1} parent=11 // pred_fallthru
          _
        // Predicated region
        $region29: #{tpu_custom_call.1} parent=11 // pred_check
          %p485 = pneg %p216
        $region30: #{tpu_custom_call.1} parent=11 // pred_check_branch
          %487 = sbr.rel (%p485) target = $region32
        $region31: #{tpu_custom_call.1} parent=11 // pred_region
          _
        $region32: #{tpu_custom_call.1} parent=11 // pred_fallthru
          _
        // Predicated region
        $region33: #{tpu_custom_call.1} parent=11 // pred_check
          %p488 = pneg %p237
        $region34: #{tpu_custom_call.1} parent=11 // pred_check_branch
          %490 = sbr.rel (%p488) target = $region36
        $region35: #{tpu_custom_call.1} parent=11 // pred_region
          _
        $region36: #{tpu_custom_call.1} parent=11 // pred_fallthru
          _
        // Predicated region
        $region37: #{tpu_custom_call.1} parent=11 // pred_check
          %p491 = pneg %p258
        $region38: #{tpu_custom_call.1} parent=11 // pred_check_branch
          %493 = sbr.rel (%p491) target = $region40
        $region39: #{tpu_custom_call.1} parent=11 // pred_region
          _
        $region40: #{tpu_custom_call.1} parent=11 // pred_fallthru
          _
        // Predicated region
        $region41: #{tpu_custom_call.1} parent=11 // pred_check
          %p494 = pneg %p279
        $region42: #{tpu_custom_call.1} parent=11 // pred_check_branch
          %496 = sbr.rel (%p494) target = $region44
        $region43: #{tpu_custom_call.1} parent=11 // pred_region
          _
        $region44: #{tpu_custom_call.1} parent=11 // pred_fallthru
          _
        // Predicated region
        $region45: #{tpu_custom_call.1} parent=11 // pred_check
          %p497 = pneg %p300
        $region46: #{tpu_custom_call.1} parent=11 // pred_check_branch
          %499 = sbr.rel (%p497) target = $region48
        $region47: #{tpu_custom_call.1} parent=11 // pred_region
          _
        $region48: #{tpu_custom_call.1} parent=11 // pred_fallthru
          _
        // Predicated region
        $region49: #{tpu_custom_call.1} parent=11 // pred_check
          %p500 = pneg %p321
        $region50: #{tpu_custom_call.1} parent=11 // pred_check_branch
          %502 = sbr.rel (%p500) target = $region52
        $region51: #{tpu_custom_call.1} parent=11 // pred_region
          _
        $region52: #{tpu_custom_call.1} parent=11 // pred_fallthru
          _
        // Predicated region
        $region53: #{tpu_custom_call.1} parent=11 // pred_check
          %p503 = pneg %p342
        $region54: #{tpu_custom_call.1} parent=11 // pred_check_branch
          %505 = sbr.rel (%p503) target = $region56
        $region55: #{tpu_custom_call.1} parent=11 // pred_region
          _
        $region56: #{tpu_custom_call.1} parent=11 // pred_fallthru
          _
        // Predicated region
        $region57: #{tpu_custom_call.1} parent=11 // pred_check
          %p506 = pneg %p363
        $region58: #{tpu_custom_call.1} parent=11 // pred_check_branch
          %508 = sbr.rel (%p506) target = $region60
        $region59: #{tpu_custom_call.1} parent=11 // pred_region
          _
        $region60: #{tpu_custom_call.1} parent=11 // pred_fallthru
          _
        // Predicated region
        $region61: #{tpu_custom_call.1} parent=11 // pred_check
          %p509 = pneg %p384
        $region62: #{tpu_custom_call.1} parent=11 // pred_check_branch
          %511 = sbr.rel (%p509) target = $region64
        $region63: #{tpu_custom_call.1} parent=11 // pred_region
          _
        $region64: #{tpu_custom_call.1} parent=11 // pred_fallthru
          _
        // Predicated region
        $region65: #{tpu_custom_call.1} parent=11 // pred_check
          %p512 = pneg %p405
        $region66: #{tpu_custom_call.1} parent=11 // pred_check_branch
          %514 = sbr.rel (%p512) target = $region68
        $region67: #{tpu_custom_call.1} parent=11 // pred_region
          _
        $region68: #{tpu_custom_call.1} parent=11 // pred_fallthru
          _
      $region12: #{tpu_custom_call.1} parent=5 // pred_fallthru
        _
      %p515 = scmp.lt.s32.totalorder %s33, 2
      // Predicated region
      $region69: #{tpu_custom_call.1} parent=5 // pred_check
        %p516 = pneg %p515
      $region70: #{tpu_custom_call.1} parent=5 // pred_check_branch
        %518 = sbr.rel (%p516) target = $region72
      $region71: #{tpu_custom_call.1} parent=5 // pred_region
        // Predicated region
        $region73: #{tpu_custom_call.1} parent=71 // pred_check
          %p519 = pneg %p53
        $region74: #{tpu_custom_call.1} parent=71 // pred_check_branch
          %521 = sbr.rel (%p519) target = $region76
        $region75: #{tpu_custom_call.1} parent=71 // pred_region
          %s522 = sand.u32 %s43, 1
          %s523 = scalar_lea.sflag [#allocation3], %s522
          %s524 = sand.u32 %s43, 1
          %s525 = smul.addr %s524, 32
          %s526 = scalar_lea.vmem [#allocation2], %s525
          %528 = vsyncadd %s523, 0
          %s529 = smul.addr %s33, 4
          %s530 = smul.addr %s529, 8
          %s531 = scalar_lea.hbm %s0, %s530
          %s532 = sshll.u32 %s531, 4
          %s533 = int_to_ptr.hbm [resolvable:$true] %s532
          %s534 = sshll.u32 %s526, 4
          %s535 = int_to_ptr.vmem [resolvable:$true] %s534
          %540 = dma.hbm_to_vmem [thread:$0]  %s533, 512, %s535, %s523, 256, 256, 16
        $region76: #{tpu_custom_call.1} parent=71 // pred_fallthru
          _
        // Predicated region
        $region77: #{tpu_custom_call.1} parent=71 // pred_check
          %p541 = pneg %p79
        $region78: #{tpu_custom_call.1} parent=71 // pred_check_branch
          %543 = sbr.rel (%p541) target = $region80
        $region79: #{tpu_custom_call.1} parent=71 // pred_region
          %p544 = scmp.lt.s32.totalorder %s33, 1
          %s545 = scalar_select %p544, %s33, 1
          %s546 = smul.addr %s545, 8
          %s547 = smul.addr %s546, 8
          %s548 = scalar_lea.vmem %s1, %s547
        $region80: #{tpu_custom_call.1} parent=71 // pred_fallthru
          _
        // Predicated region
        $region81: #{tpu_custom_call.1} parent=71 // pred_check
          %p549 = pneg %p105
        $region82: #{tpu_custom_call.1} parent=71 // pred_check_branch
          %551 = sbr.rel (%p549) target = $region84
        $region83: #{tpu_custom_call.1} parent=71 // pred_region
          %s552 = sand.u32 %s33, 1
          %s553 = scalar_lea.sflag [#allocation6], %s552
          %s554 = sand.u32 %s95, 1
          %s555 = smul.addr %s554, 32
          %s556 = scalar_lea.vmem [#allocation5], %s555
          %558 = vsyncadd %s553, 0
          %s559 = smul.addr %s33, 4
          %s560 = smul.addr %s559, 8
          %s561 = scalar_lea.hbm %s2, %s560
          %s562 = sshll.u32 %s561, 4
          %s563 = int_to_ptr.hbm [resolvable:$true] %s562
          %s564 = sshll.u32 %s556, 4
          %s565 = int_to_ptr.vmem [resolvable:$true] %s564
          %570 = dma.hbm_to_vmem [thread:$0]  %s563, 512, %s565, %s553, 256, 256, 16
        $region84: #{tpu_custom_call.1} parent=71 // pred_fallthru
          _
      $region72: #{tpu_custom_call.1} parent=5 // pred_fallthru
        _
      %p571 = scmp.le.s32.totalorder 1, %s33
      %p572 = scmp.lt.s32.totalorder %s33, 3
      %p573 = pnand %p571, %p572
      %p574 = pneg %p573
      // Predicated region
      $region85: #{tpu_custom_call.1} parent=5 // pred_check
        _
      $region86: #{tpu_custom_call.1} parent=5 // pred_check_branch
        %576 = sbr.rel (%p573) target = $region88
      $region87: #{tpu_custom_call.1} parent=5 // pred_region
        %s577 = ssub.s32 %s33, 1
        %s578 = sand.u32 %s46, 1
        %s579 = scalar_lea.sflag [#allocation3], %s578
        %s580 = sand.u32 %s46, 1
        %s581 = smul.addr %s580, 32
        %s582 = scalar_lea.vmem [#allocation2], %s581
        // Predicated region
        $region89: #{tpu_custom_call.1} parent=87 // pred_check
          %p583 = pneg %p59
        $region90: #{tpu_custom_call.1} parent=87 // pred_check_branch
          %585 = sbr.rel (%p583) target = $region92
        $region91: #{tpu_custom_call.1} parent=87 // pred_region
          %587 = dma.done %s579, 512
        $region92: #{tpu_custom_call.1} parent=87 // pred_fallthru
          _
        %s588 = sand.u32 %s38, 1
        %s589 = scalar_lea.sflag [#allocation6], %s588
        %s590 = sand.u32 %s98, 1
        %s591 = smul.addr %s590, 32
        %s592 = scalar_lea.vmem [#allocation5], %s591
        // Predicated region
        $region93: #{tpu_custom_call.1} parent=87 // pred_check
          %p593 = pneg %p111
        $region94: #{tpu_custom_call.1} parent=87 // pred_check_branch
          %595 = sbr.rel (%p593) target = $region96
        $region95: #{tpu_custom_call.1} parent=87 // pred_region
          %597 = dma.done %s589, 512
        $region96: #{tpu_custom_call.1} parent=87 // pred_fallthru
          _
        // Predicated region
        $region97: #{tpu_custom_call.1} parent=87 // pred_check
          %p598 = pneg %p132
        $region98: #{tpu_custom_call.1} parent=87 // pred_check_branch
          %600 = sbr.rel (%p598) target = $region100
        $region99: #{tpu_custom_call.1} parent=87 // pred_region
          %602 = dma.done [#allocation6], 64
        $region100: #{tpu_custom_call.1} parent=87 // pred_fallthru
          _
        // Predicated region
        $region101: #{tpu_custom_call.1} parent=87 // pred_check
          %p603 = pneg %p153
        $region102: #{tpu_custom_call.1} parent=87 // pred_check_branch
          %605 = sbr.rel (%p603) target = $region104
        $region103: #{tpu_custom_call.1} parent=87 // pred_region
          %607 = dma.done [#allocation9], 64
        $region104: #{tpu_custom_call.1} parent=87 // pred_fallthru
          _
        // Predicated region
        $region105: #{tpu_custom_call.1} parent=87 // pred_check
          %p608 = pneg %p174
        $region106: #{tpu_custom_call.1} parent=87 // pred_check_branch
          %610 = sbr.rel (%p608) target = $region108
        $region107: #{tpu_custom_call.1} parent=87 // pred_region
          %612 = dma.done [#allocation9], 64
        $region108: #{tpu_custom_call.1} parent=87 // pred_fallthru
          _
        %s613 = sand.u32 %s46, 1
        %s614 = scalar_lea.sflag [#allocation3], %s613
        %s615 = sand.u32 %s46, 1
        %s616 = smul.addr %s615, 32
        %s617 = scalar_lea.vmem [#allocation2], %s616
        %p618 = pneg %p59
        %p619 = pneg %p56
        %p620 = scmp.lt.s32.totalorder %s38, 1
        %s621 = scalar_select %p620, %s38, 1
        %s622 = smul.addr %s621, 8
        %s623 = smul.addr %s622, 8
        %s624 = scalar_lea.vmem %s1, %s623
        %p625 = pneg %p85
        %p626 = pneg %p82
        %s627 = sand.u32 %s38, 1
        %s628 = scalar_lea.sflag [#allocation6], %s627
        %s629 = sand.u32 %s98, 1
        %s630 = smul.addr %s629, 32
        %s631 = scalar_lea.vmem [#allocation5], %s630
        %p632 = pneg %p111
        %p633 = pneg %p108
        %p634 = pneg %p132
        %p635 = pneg %p129
        %p636 = pneg %p153
        %p637 = pneg %p150
        %p638 = pneg %p174
        %p639 = pneg %p171
        %p640 = pneg %p195
        %p641 = pneg %p192
        %p642 = pneg %p216
        %p643 = pneg %p213
        %p644 = pneg %p237
        %p645 = pneg %p234
        %p646 = pneg %p258
        %p647 = pneg %p255
        %p648 = pneg %p279
        %p649 = pneg %p276
        %p650 = pneg %p300
        %p651 = pneg %p297
        %p652 = pneg %p321
        %p653 = pneg %p318
        %p654 = pneg %p342
        %p655 = pneg %p339
        %p656 = pneg %p363
        %p657 = pneg %p360
        %p658 = pneg %p384
        %p659 = pneg %p381
        %p660 = pneg %p405
        %p661 = pneg %p402
        %p662 = pneg %p431
        %p663 = pneg %p428
        %s664 = sand.u32 %s418, 1
        %s665 = scalar_lea.sflag [#allocation4], %s664
        %s666 = sand.u32 %s418, 1
        %s667 = smul.addr %s666, 32
        %s668 = scalar_lea.vmem [#allocation11], %s667
        %p669 = scmp.lt.s32.totalorder %s38, 1
        %s670 = scalar_select %p669, %s38, 1
        %s671 = smul.addr %s670, 8
        %s672 = smul.addr %s671, 8
        %s673 = scalar_lea.vmem %s1, %s672
        %v674 = vld [vmem:[%s6] sm:$0xf]
        %v675 = vld [vmem:[%s582] sm:$0xff]
        %v676 = vld [vmem:[%s582 + $0x8] sm:$0xff]
        %v677 = vld [vmem:[%s582 + $0x10] sm:$0xff]
        %v678 = vld [vmem:[%s582 + $0x18] sm:$0xff]
        %v679 = vadd.f32 %v675, %v676
        %680 = vadd.xlane.f32.xlu0 %v679
        %v681 = vpop.xlane.xlu0 %680
        %v682 = vadd.f32 %v677, %v678
        %683 = vadd.xlane.f32.xlu0 %v682
        %v684 = vpop.xlane.xlu0 %683
        %v685 = vmul.f32 %v681, 0.00390625
        %v686 = vmul.f32 %v684, 0.00390625
        %v687 = vld [vmem:[#allocation7] sm:$0xf]
        %vm688 = vcmask 130048
        %v690 = vsel %vm688, %v687, 0
        %692 = vmatpush.msra.mxu0 0.0
        %693 = vmatpush.msra.mxu0 0.0
        %694 = vmatpush.msra.mxu0 0.0
        %695 = vmatpush.msra.mxu0 0.0
        %696 = vmatpush.msra.mxu0 0.0
        %697 = vmatpush.msra.mxu0 0.0
        %698 = vmatpush.msra.mxu0 0.0
        %699 = vmatpush.msra.mxu0 0.0
        %700 = vmatpush.msra.mxu0 0.0
        %701 = vmatpush.msra.mxu0 0.0
        %702 = vmatpush.msra.mxu0 0.0
        %703 = vmatpush.msra.mxu0 0.0
        %704 = vmatpush.msra.mxu0 0.0
        %705 = vmatpush.msra.mxu0 0.0
        %706 = vmatpush.msra.mxu0 %v686
        %707 = vmatpush.msra.mxu0 %v685
        %708 = vmatmul.f32.gmra.mxu0 %v690
        %v709 = vpop.f32.mrf.mxu0
        %v710 = vadd.f32 0.0, %v709
        %711 = vdwg.mxu0
        %v712 = vadd.f32 %v674, %v710
        %v713 = vld [vmem:[%s673] sm:$0xff]
        %v714 = vld [vmem:[%s673 + $0x8] sm:$0xff]
        %v715 = vld [vmem:[%s673 + $0x10] sm:$0xff]
        %v716 = vld [vmem:[%s673 + $0x18] sm:$0xff]
        %v717 = vld [vmem:[%s673 + $0x20] sm:$0xff]
        %v718 = vld [vmem:[%s673 + $0x28] sm:$0xff]
        %v719 = vld [vmem:[%s673 + $0x30] sm:$0xff]
        %v720 = vld [vmem:[%s673 + $0x38] sm:$0xff]
        %v721 = vadd.f32 %v713, %v714
        %722 = vadd.xlane.f32.xlu0 %v721
        %v723 = vpop.xlane.xlu0 %722
        %v724 = vadd.f32 %v715, %v716
        %725 = vadd.xlane.f32.xlu0 %v724
        %v726 = vpop.xlane.xlu0 %725
        %v727 = vadd.f32 %v717, %v718
        %728 = vadd.xlane.f32.xlu0 %v727
        %v729 = vpop.xlane.xlu0 %728
        %v730 = vadd.f32 %v719, %v720
        %731 = vadd.xlane.f32.xlu0 %v730
        %v732 = vpop.xlane.xlu0 %731
        %v733 = vmul.f32 %v723, 0.00390625
        %v734 = vmul.f32 %v726, 0.00390625
        %v735 = vmul.f32 %v729, 0.00390625
        %v736 = vmul.f32 %v732, 0.00390625
        %v737 = vld [vmem:[#allocation8] sm:$0xf]
        %vm738 = vcmask 261120
        %v740 = vsel %vm738, %v737, 0
        %742 = vmatpush.msra.mxu0 0.0
        %743 = vmatpush.msra.mxu0 0.0
        %744 = vmatpush.msra.mxu0 0.0
        %745 = vmatpush.msra.mxu0 0.0
        %746 = vmatpush.msra.mxu0 0.0
        %747 = vmatpush.msra.mxu0 0.0
        %748 = vmatpush.msra.mxu0 0.0
        %749 = vmatpush.msra.mxu0 0.0
        %750 = vmatpush.msra.mxu0 0.0
        %751 = vmatpush.msra.mxu0 0.0
        %752 = vmatpush.msra.mxu0 0.0
        %753 = vmatpush.msra.mxu0 0.0
        %754 = vmatpush.msra.mxu0 %v736
        %755 = vmatpush.msra.mxu0 %v735
        %756 = vmatpush.msra.mxu0 %v734
        %757 = vmatpush.msra.mxu0 %v733
        %758 = vmatmul.f32.gmra.mxu0 %v740
        %v759 = vpop.f32.mrf.mxu0
        %v760 = vadd.f32 0.0, %v759
        %761 = vdwg.mxu0
        %v762 = vadd.f32 %v712, %v760
        %v763 = vld [vmem:[%s592] sm:$0xff]
        %v764 = vld [vmem:[%s592 + $0x8] sm:$0xff]
        %v765 = vld [vmem:[%s592 + $0x10] sm:$0xff]
        %v766 = vld [vmem:[%s592 + $0x18] sm:$0xff]
        %v767 = vadd.f32 %v763, %v764
        %768 = vadd.xlane.f32.xlu0 %v767
        %v769 = vpop.xlane.xlu0 %768
        %v770 = vadd.f32 %v765, %v766
        %771 = vadd.xlane.f32.xlu0 %v770
        %v772 = vpop.xlane.xlu0 %771
        %v773 = vmul.f32 %v769, 0.00390625
        %v774 = vmul.f32 %v772, 0.00390625
        %v775 = vld [vmem:[#allocation10] sm:$0xf]
        %v777 = vsel %vm688, %v775, 0
        %779 = vmatpush.msra.mxu0 0.0
        %780 = vmatpush.msra.mxu0 0.0
        %781 = vmatpush.msra.mxu0 0.0
        %782 = vmatpush.msra.mxu0 0.0
        %783 = vmatpush.msra.mxu0 0.0
        %784 = vmatpush.msra.mxu0 0.0
        %785 = vmatpush.msra.mxu0 0.0
        %786 = vmatpush.msra.mxu0 0.0
        %787 = vmatpush.msra.mxu0 0.0
        %788 = vmatpush.msra.mxu0 0.0
        %789 = vmatpush.msra.mxu0 0.0
        %790 = vmatpush.msra.mxu0 0.0
        %791 = vmatpush.msra.mxu0 0.0
        %792 = vmatpush.msra.mxu0 0.0
        %793 = vmatpush.msra.mxu0 %v774
        %794 = vmatpush.msra.mxu0 %v773
        %795 = vmatmul.f32.gmra.mxu0 %v777
        %v796 = vpop.f32.mrf.mxu0
        %v797 = vadd.f32 0.0, %v796
        %798 = vdwg.mxu0
        %v799 = vadd.f32 %v762, %v797
        %v800 = vmax.f32 %v799, 0.0
        %v801 = vld [vmem:[%s7] sm:$0xff]
        %v802 = vld [vmem:[%s7 + $0x8] sm:$0xff]
        %v803 = vld [vmem:[%s10] sm:$0xff]
        %v804 = vld [vmem:[%s10 + $0x8] sm:$0xff]
        %vm805 = vcmask 31744
        %v807 = vsel %vm805, %v801, 0
        %v810 = vsel %vm805, %v802, 0
        %vm812 = vcmask 1043456
        %v814 = vsel %vm812, %v800, 0
        %816 = vmatpush.msra.mxu0 0.0
        %817 = vmatpush.msra.mxu0 0.0
        %818 = vmatpush.msra.mxu0 0.0
        %819 = vmatpush.msra.mxu0 0.0
        %820 = vmatpush.msra.mxu0 0.0
        %821 = vmatpush.msra.mxu0 0.0
        %822 = vmatpush.msra.mxu0 0.0
        %823 = vmatpush.msra.mxu0 0.0
        %824 = vmatpush.msra.mxu0 0.0
        %825 = vmatpush.msra.mxu0 0.0
        %826 = vmatpush.msra.mxu0 0.0
        %827 = vmatpush.msra.mxu0 0.0
        %828 = vmatpush.msra.mxu0 0.0
        %829 = vmatpush.msra.mxu0 0.0
        %830 = vmatpush.msra.mxu0 0.0
        %831 = vmatpush.msra.mxu0 %v814
        %832 = vmatmul.f32.gmra.mxu0 %v807
        %v833 = vpop.f32.mrf.mxu0
        %v834 = vadd.f32 %v803, %v833
        %835 = vmatmul.f32.gmra.mxu0 %v810
        %v836 = vpop.f32.mrf.mxu0
        %v837 = vadd.f32 %v804, %v836
        %838 = vdwg.mxu0
        %v839 = vxor.u32 %v834, 2147483648
        %v840 = vxor.u32 %v837, 2147483648
        %v841 = vmul.f32 %v839, 1.442695
        %v842 = vpow.pop %v841
        %v843 = vmul.f32 %v840, 1.442695
        %v844 = vpow.pop %v843
        %v845 = vadd.f32 %v842, 1.0
        %v846 = vadd.f32 %v844, 1.0
        %v847 = vrcp.pop %v845
        %v848 = vmul.f32 %v845, %v847
        %v849 = vsub.f32 1.0, %v848
        %v850 = vmul.f32 %v847, %v849
        %v851 = vadd.f32 %v847, %v850
        %vm852 = vweird.f32 %v845
        %vm853 = vweird.f32 %v847
        %vm854 = vmor %vm852, %vm853
        %v855 = vsel %vm854, %v847, %v851
        %v856 = vand.u32 2147483647, %v845
        %vm857 = vcmp.eq.f32.partialorder %v856, 8.507059e+37
        %v858 = vand.u32 %v845, 2147483648
        %v859 = vor.u32 1.1754944e-38, %v858
        %v860 = vsel %vm857, %v859, %v855
        %v861 = vmul.f32 1.0, %v860
        %v862 = vrcp.pop %v846
        %v863 = vmul.f32 %v846, %v862
        %v864 = vsub.f32 1.0, %v863
        %v865 = vmul.f32 %v862, %v864
        %v866 = vadd.f32 %v862, %v865
        %vm867 = vweird.f32 %v846
        %vm868 = vweird.f32 %v862
        %vm869 = vmor %vm867, %vm868
        %v870 = vsel %vm869, %v862, %v866
        %v871 = vand.u32 2147483647, %v846
        %vm872 = vcmp.eq.f32.partialorder %v871, 8.507059e+37
        %v873 = vand.u32 %v846, 2147483648
        %v874 = vor.u32 1.1754944e-38, %v873
        %v875 = vsel %vm872, %v874, %v870
        %v876 = vmul.f32 1.0, %v875
        %878 = vset.pattern.permute.xlu0 0
        %879 = vperm.xlu0 %878, %v861
        %v880 = vpop.permute.xlu0 %879
        %883 = vset.pattern.permute.xlu0 0
        %884 = vperm.xlu0 %883, %v876
        %v885 = vpop.permute.xlu0 %884
        %v887 = vmul.f32 %v675, %v880
        %v888 = vmul.f32 %v676, %v880
        %v889 = vmul.f32 %v677, %v885
        %v890 = vmul.f32 %v678, %v885
        %v891 = vld [vmem:[%s13] sm:$0xff]
        %v892 = vld [vmem:[%s13 + $0x8] sm:$0xff]
        %v893 = vld [vmem:[%s8] sm:$0xff]
        %v894 = vld [vmem:[%s8 + $0x8] sm:$0xff]
        %v895 = vld [vmem:[%s8 + $0x10] sm:$0xff]
        %v896 = vld [vmem:[%s8 + $0x18] sm:$0xff]
        %v897 = vld [vmem:[%s11] sm:$0xff]
        %v898 = vld [vmem:[%s11 + $0x8] sm:$0xff]
        %v899 = vld [vmem:[%s11 + $0x10] sm:$0xff]
        %v900 = vld [vmem:[%s11 + $0x18] sm:$0xff]
        %v902 = vsel %vm805, %v893, 0
        %v905 = vsel %vm805, %v894, 0
        %v908 = vsel %vm805, %v895, 0
        %v911 = vsel %vm805, %v896, 0
        %913 = vmatpush.msra.mxu0 0.0
        %914 = vmatpush.msra.mxu0 0.0
        %915 = vmatpush.msra.mxu0 0.0
        %916 = vmatpush.msra.mxu0 0.0
        %917 = vmatpush.msra.mxu0 0.0
        %918 = vmatpush.msra.mxu0 0.0
        %919 = vmatpush.msra.mxu0 0.0
        %920 = vmatpush.msra.mxu0 0.0
        %921 = vmatpush.msra.mxu0 0.0
        %922 = vmatpush.msra.mxu0 0.0
        %923 = vmatpush.msra.mxu0 0.0
        %924 = vmatpush.msra.mxu0 0.0
        %925 = vmatpush.msra.mxu0 0.0
        %926 = vmatpush.msra.mxu0 0.0
        %927 = vmatpush.msra.mxu0 0.0
        %928 = vmatpush.msra.mxu0 %v814
        %929 = vmatmul.f32.gmra.mxu0 %v902
        %v930 = vpop.f32.mrf.mxu0
        %v931 = vadd.f32 %v897, %v930
        %932 = vmatmul.f32.gmra.mxu0 %v905
        %v933 = vpop.f32.mrf.mxu0
        %v934 = vadd.f32 %v898, %v933
        %935 = vmatmul.f32.gmra.mxu0 %v908
        %v936 = vpop.f32.mrf.mxu0
        %v937 = vadd.f32 %v899, %v936
        %938 = vmatmul.f32.gmra.mxu0 %v911
        %v939 = vpop.f32.mrf.mxu0
        %v940 = vadd.f32 %v900, %v939
        %941 = vdwg.mxu0
        %v942 = vxor.u32 %v931, 2147483648
        %v943 = vxor.u32 %v934, 2147483648
        %v944 = vxor.u32 %v937, 2147483648
        %v945 = vxor.u32 %v940, 2147483648
        %v946 = vmul.f32 %v942, 1.442695
        %v947 = vpow.pop %v946
        %v948 = vmul.f32 %v943, 1.442695
        %v949 = vpow.pop %v948
        %v950 = vmul.f32 %v944, 1.442695
        %v951 = vpow.pop %v950
        %v952 = vmul.f32 %v945, 1.442695
        %v953 = vpow.pop %v952
        %v954 = vadd.f32 %v947, 1.0
        %v955 = vadd.f32 %v949, 1.0
        %v956 = vadd.f32 %v951, 1.0
        %v957 = vadd.f32 %v953, 1.0
        %v958 = vrcp.pop %v954
        %v959 = vmul.f32 %v954, %v958
        %v960 = vsub.f32 1.0, %v959
        %v961 = vmul.f32 %v958, %v960
        %v962 = vadd.f32 %v958, %v961
        %vm963 = vweird.f32 %v954
        %vm964 = vweird.f32 %v958
        %vm965 = vmor %vm963, %vm964
        %v966 = vsel %vm965, %v958, %v962
        %v967 = vand.u32 2147483647, %v954
        %vm968 = vcmp.eq.f32.partialorder %v967, 8.507059e+37
        %v969 = vand.u32 %v954, 2147483648
        %v970 = vor.u32 1.1754944e-38, %v969
        %v971 = vsel %vm968, %v970, %v966
        %v972 = vmul.f32 1.0, %v971
        %v973 = vrcp.pop %v955
        %v974 = vmul.f32 %v955, %v973
        %v975 = vsub.f32 1.0, %v974
        %v976 = vmul.f32 %v973, %v975
        %v977 = vadd.f32 %v973, %v976
        %vm978 = vweird.f32 %v955
        %vm979 = vweird.f32 %v973
        %vm980 = vmor %vm978, %vm979
        %v981 = vsel %vm980, %v973, %v977
        %v982 = vand.u32 2147483647, %v955
        %vm983 = vcmp.eq.f32.partialorder %v982, 8.507059e+37
        %v984 = vand.u32 %v955, 2147483648
        %v985 = vor.u32 1.1754944e-38, %v984
        %v986 = vsel %vm983, %v985, %v981
        %v987 = vmul.f32 1.0, %v986
        %v988 = vrcp.pop %v956
        %v989 = vmul.f32 %v956, %v988
        %v990 = vsub.f32 1.0, %v989
        %v991 = vmul.f32 %v988, %v990
        %v992 = vadd.f32 %v988, %v991
        %vm993 = vweird.f32 %v956
        %vm994 = vweird.f32 %v988
        %vm995 = vmor %vm993, %vm994
        %v996 = vsel %vm995, %v988, %v992
        %v997 = vand.u32 2147483647, %v956
        %vm998 = vcmp.eq.f32.partialorder %v997, 8.507059e+37
        %v999 = vand.u32 %v956, 2147483648
        %v1000 = vor.u32 1.1754944e-38, %v999
        %v1001 = vsel %vm998, %v1000, %v996
        %v1002 = vmul.f32 1.0, %v1001
        %v1003 = vrcp.pop %v957
        %v1004 = vmul.f32 %v957, %v1003
        %v1005 = vsub.f32 1.0, %v1004
        %v1006 = vmul.f32 %v1003, %v1005
        %v1007 = vadd.f32 %v1003, %v1006
        %vm1008 = vweird.f32 %v957
        %vm1009 = vweird.f32 %v1003
        %vm1010 = vmor %vm1008, %vm1009
        %v1011 = vsel %vm1010, %v1003, %v1007
        %v1012 = vand.u32 2147483647, %v957
        %vm1013 = vcmp.eq.f32.partialorder %v1012, 8.507059e+37
        %v1014 = vand.u32 %v957, 2147483648
        %v1015 = vor.u32 1.1754944e-38, %v1014
        %v1016 = vsel %vm1013, %v1015, %v1011
        %v1017 = vmul.f32 1.0, %v1016
        %1019 = vset.pattern.permute.xlu0 0
        %1020 = vperm.xlu0 %1019, %v972
        %v1021 = vpop.permute.xlu0 %1020
        %1024 = vset.pattern.permute.xlu0 0
        %1025 = vperm.xlu0 %1024, %v987
        %v1026 = vpop.permute.xlu0 %1025
        %1029 = vset.pattern.permute.xlu0 0
        %1030 = vperm.xlu0 %1029, %v1002
        %v1031 = vpop.permute.xlu0 %1030
        %1034 = vset.pattern.permute.xlu0 0
        %1035 = vperm.xlu0 %1034, %v1017
        %v1036 = vpop.permute.xlu0 %1035
        %v1038 = vmul.f32 %v713, %v1021
        %v1039 = vmul.f32 %v714, %v1021
        %v1040 = vmul.f32 %v715, %v1026
        %v1041 = vmul.f32 %v716, %v1026
        %v1042 = vmul.f32 %v717, %v1031
        %v1043 = vmul.f32 %v718, %v1031
        %v1044 = vmul.f32 %v719, %v1036
        %v1045 = vmul.f32 %v720, %v1036
        %v1046 = vld [vmem:[%s14] sm:$0xff]
        %v1047 = vld [vmem:[%s14 + $0x8] sm:$0xff]
        %v1049 = vsel %vm738, %v1046, 0
        %v1052 = vsel %vm738, %v1047, 0
        %1054 = vmatpush.msra.mxu0 0.0
        %1055 = vmatpush.msra.mxu0 0.0
        %1056 = vmatpush.msra.mxu0 0.0
        %1057 = vmatpush.msra.mxu0 0.0
        %1058 = vmatpush.msra.mxu0 0.0
        %1059 = vmatpush.msra.mxu0 0.0
        %1060 = vmatpush.msra.mxu0 0.0
        %1061 = vmatpush.msra.mxu0 0.0
        %1062 = vmatpush.msra.mxu0 0.0
        %1063 = vmatpush.msra.mxu0 0.0
        %1064 = vmatpush.msra.mxu0 0.0
        %1065 = vmatpush.msra.mxu0 0.0
        %1066 = vmatpush.msra.mxu0 %v1044
        %1067 = vmatpush.msra.mxu0 %v1042
        %1068 = vmatpush.msra.mxu0 %v1040
        %1069 = vmatpush.msra.mxu0 %v1038
        %1070 = vmatmul.f32.gmra.mxu0 %v1049
        %v1071 = vpop.f32.mrf.mxu0
        %v1072 = vadd.f32 0.0, %v1071
        %1073 = vmatmul.f32.gmra.mxu0 %v1052
        %v1074 = vpop.f32.mrf.mxu0
        %v1075 = vadd.f32 0.0, %v1074
        %1076 = vdwg.mxu0
        %1077 = vmatpush.msra.mxu0 0.0
        %1078 = vmatpush.msra.mxu0 0.0
        %1079 = vmatpush.msra.mxu0 0.0
        %1080 = vmatpush.msra.mxu0 0.0
        %1081 = vmatpush.msra.mxu0 0.0
        %1082 = vmatpush.msra.mxu0 0.0
        %1083 = vmatpush.msra.mxu0 0.0
        %1084 = vmatpush.msra.mxu0 0.0
        %1085 = vmatpush.msra.mxu0 0.0
        %1086 = vmatpush.msra.mxu0 0.0
        %1087 = vmatpush.msra.mxu0 0.0
        %1088 = vmatpush.msra.mxu0 0.0
        %1089 = vmatpush.msra.mxu0 %v1045
        %1090 = vmatpush.msra.mxu0 %v1043
        %1091 = vmatpush.msra.mxu0 %v1041
        %1092 = vmatpush.msra.mxu0 %v1039
        %1093 = vmatmul.f32.gmra.mxu0 %v1049
        %v1094 = vpop.f32.mrf.mxu0
        %v1095 = vadd.f32 0.0, %v1094
        %1096 = vmatmul.f32.gmra.mxu0 %v1052
        %v1097 = vpop.f32.mrf.mxu0
        %v1098 = vadd.f32 0.0, %v1097
        %1099 = vdwg.mxu0
        %v1101 = vsel %vm688, %v891, 0
        %v1104 = vsel %vm688, %v892, 0
        %1106 = vmatpush.msra.mxu0 0.0
        %1107 = vmatpush.msra.mxu0 0.0
        %1108 = vmatpush.msra.mxu0 0.0
        %1109 = vmatpush.msra.mxu0 0.0
        %1110 = vmatpush.msra.mxu0 0.0
        %1111 = vmatpush.msra.mxu0 0.0
        %1112 = vmatpush.msra.mxu0 0.0
        %1113 = vmatpush.msra.mxu0 0.0
        %1114 = vmatpush.msra.mxu0 0.0
        %1115 = vmatpush.msra.mxu0 0.0
        %1116 = vmatpush.msra.mxu0 0.0
        %1117 = vmatpush.msra.mxu0 0.0
        %1118 = vmatpush.msra.mxu0 0.0
        %1119 = vmatpush.msra.mxu0 0.0
        %1120 = vmatpush.msra.mxu0 %v889
        %1121 = vmatpush.msra.mxu0 %v887
        %1122 = vmatmul.f32.gmra.mxu0 %v1101
        %v1123 = vpop.f32.mrf.mxu0
        %v1124 = vadd.f32 %v1072, %v1123
        %1125 = vmatmul.f32.gmra.mxu0 %v1104
        %v1126 = vpop.f32.mrf.mxu0
        %v1127 = vadd.f32 %v1075, %v1126
        %1128 = vdwg.mxu0
        %1129 = vmatpush.msra.mxu0 0.0
        %1130 = vmatpush.msra.mxu0 0.0
        %1131 = vmatpush.msra.mxu0 0.0
        %1132 = vmatpush.msra.mxu0 0.0
        %1133 = vmatpush.msra.mxu0 0.0
        %1134 = vmatpush.msra.mxu0 0.0
        %1135 = vmatpush.msra.mxu0 0.0
        %1136 = vmatpush.msra.mxu0 0.0
        %1137 = vmatpush.msra.mxu0 0.0
        %1138 = vmatpush.msra.mxu0 0.0
        %1139 = vmatpush.msra.mxu0 0.0
        %1140 = vmatpush.msra.mxu0 0.0
        %1141 = vmatpush.msra.mxu0 0.0
        %1142 = vmatpush.msra.mxu0 0.0
        %1143 = vmatpush.msra.mxu0 %v890
        %1144 = vmatpush.msra.mxu0 %v888
        %1145 = vmatmul.f32.gmra.mxu0 %v1101
        %v1146 = vpop.f32.mrf.mxu0
        %v1147 = vadd.f32 %v1095, %v1146
        %1148 = vmatmul.f32.gmra.mxu0 %v1104
        %v1149 = vpop.f32.mrf.mxu0
        %v1150 = vadd.f32 %v1098, %v1149
        %1151 = vdwg.mxu0
        %v1152 = vld [vmem:[%s9] sm:$0xff]
        %v1153 = vld [vmem:[%s9 + $0x8] sm:$0xff]
        %v1154 = vld [vmem:[%s12] sm:$0xff]
        %v1155 = vld [vmem:[%s12 + $0x8] sm:$0xff]
        %v1157 = vsel %vm805, %v1152, 0
        %v1160 = vsel %vm805, %v1153, 0
        %1162 = vmatpush.msra.mxu0 0.0
        %1163 = vmatpush.msra.mxu0 0.0
        %1164 = vmatpush.msra.mxu0 0.0
        %1165 = vmatpush.msra.mxu0 0.0
        %1166 = vmatpush.msra.mxu0 0.0
        %1167 = vmatpush.msra.mxu0 0.0
        %1168 = vmatpush.msra.mxu0 0.0
        %1169 = vmatpush.msra.mxu0 0.0
        %1170 = vmatpush.msra.mxu0 0.0
        %1171 = vmatpush.msra.mxu0 0.0
        %1172 = vmatpush.msra.mxu0 0.0
        %1173 = vmatpush.msra.mxu0 0.0
        %1174 = vmatpush.msra.mxu0 0.0
        %1175 = vmatpush.msra.mxu0 0.0
        %1176 = vmatpush.msra.mxu0 0.0
        %1177 = vmatpush.msra.mxu0 %v814
        %1178 = vmatmul.f32.gmra.mxu0 %v1157
        %v1179 = vpop.f32.mrf.mxu0
        %v1180 = vadd.f32 %v1154, %v1179
        %1181 = vmatmul.f32.gmra.mxu0 %v1160
        %v1182 = vpop.f32.mrf.mxu0
        %v1183 = vadd.f32 %v1155, %v1182
        %1184 = vdwg.mxu0
        %v1185 = vxor.u32 %v1180, 2147483648
        %v1186 = vxor.u32 %v1183, 2147483648
        %v1187 = vmul.f32 %v1185, 1.442695
        %v1188 = vpow.pop %v1187
        %v1189 = vmul.f32 %v1186, 1.442695
        %v1190 = vpow.pop %v1189
        %v1191 = vadd.f32 %v1188, 1.0
        %v1192 = vadd.f32 %v1190, 1.0
        %v1193 = vrcp.pop %v1191
        %v1194 = vmul.f32 %v1191, %v1193
        %v1195 = vsub.f32 1.0, %v1194
        %v1196 = vmul.f32 %v1193, %v1195
        %v1197 = vadd.f32 %v1193, %v1196
        %vm1198 = vweird.f32 %v1191
        %vm1199 = vweird.f32 %v1193
        %vm1200 = vmor %vm1198, %vm1199
        %v1201 = vsel %vm1200, %v1193, %v1197
        %v1202 = vand.u32 2147483647, %v1191
        %vm1203 = vcmp.eq.f32.partialorder %v1202, 8.507059e+37
        %v1204 = vand.u32 %v1191, 2147483648
        %v1205 = vor.u32 1.1754944e-38, %v1204
        %v1206 = vsel %vm1203, %v1205, %v1201
        %v1207 = vmul.f32 1.0, %v1206
        %v1208 = vrcp.pop %v1192
        %v1209 = vmul.f32 %v1192, %v1208
        %v1210 = vsub.f32 1.0, %v1209
        %v1211 = vmul.f32 %v1208, %v1210
        %v1212 = vadd.f32 %v1208, %v1211
        %vm1213 = vweird.f32 %v1192
        %vm1214 = vweird.f32 %v1208
        %vm1215 = vmor %vm1213, %vm1214
        %v1216 = vsel %vm1215, %v1208, %v1212
        %v1217 = vand.u32 2147483647, %v1192
        %vm1218 = vcmp.eq.f32.partialorder %v1217, 8.507059e+37
        %v1219 = vand.u32 %v1192, 2147483648
        %v1220 = vor.u32 1.1754944e-38, %v1219
        %v1221 = vsel %vm1218, %v1220, %v1216
        %v1222 = vmul.f32 1.0, %v1221
        %1224 = vset.pattern.permute.xlu0 0
        %1225 = vperm.xlu0 %1224, %v1207
        %v1226 = vpop.permute.xlu0 %1225
        %1229 = vset.pattern.permute.xlu0 0
        %1230 = vperm.xlu0 %1229, %v1222
        %v1231 = vpop.permute.xlu0 %1230
        %v1233 = vmul.f32 %v763, %v1226
        %v1234 = vmul.f32 %v764, %v1226
        %v1235 = vmul.f32 %v765, %v1231
        %v1236 = vmul.f32 %v766, %v1231
        %v1237 = vld [vmem:[%s15] sm:$0xff]
        %v1238 = vld [vmem:[%s15 + $0x8] sm:$0xff]
        %v1240 = vsel %vm688, %v1237, 0
        %v1243 = vsel %vm688, %v1238, 0
        %1245 = vmatpush.msra.mxu0 0.0
        %1246 = vmatpush.msra.mxu0 0.0
        %1247 = vmatpush.msra.mxu0 0.0
        %1248 = vmatpush.msra.mxu0 0.0
        %1249 = vmatpush.msra.mxu0 0.0
        %1250 = vmatpush.msra.mxu0 0.0
        %1251 = vmatpush.msra.mxu0 0.0
        %1252 = vmatpush.msra.mxu0 0.0
        %1253 = vmatpush.msra.mxu0 0.0
        %1254 = vmatpush.msra.mxu0 0.0
        %1255 = vmatpush.msra.mxu0 0.0
        %1256 = vmatpush.msra.mxu0 0.0
        %1257 = vmatpush.msra.mxu0 0.0
        %1258 = vmatpush.msra.mxu0 0.0
        %1259 = vmatpush.msra.mxu0 %v1235
        %1260 = vmatpush.msra.mxu0 %v1233
        %1261 = vmatmul.f32.gmra.mxu0 %v1240
        %v1262 = vpop.f32.mrf.mxu0
        %v1263 = vadd.f32 0.0, %v1262
        %1264 = vmatmul.f32.gmra.mxu0 %v1243
        %v1265 = vpop.f32.mrf.mxu0
        %v1266 = vadd.f32 0.0, %v1265
        %1267 = vdwg.mxu0
        %1268 = vmatpush.msra.mxu0 0.0
        %1269 = vmatpush.msra.mxu0 0.0
        %1270 = vmatpush.msra.mxu0 0.0
        %1271 = vmatpush.msra.mxu0 0.0
        %1272 = vmatpush.msra.mxu0 0.0
        %1273 = vmatpush.msra.mxu0 0.0
        %1274 = vmatpush.msra.mxu0 0.0
        %1275 = vmatpush.msra.mxu0 0.0
        %1276 = vmatpush.msra.mxu0 0.0
        %1277 = vmatpush.msra.mxu0 0.0
        %1278 = vmatpush.msra.mxu0 0.0
        %1279 = vmatpush.msra.mxu0 0.0
        %1280 = vmatpush.msra.mxu0 0.0
        %1281 = vmatpush.msra.mxu0 0.0
        %1282 = vmatpush.msra.mxu0 %v1236
        %1283 = vmatpush.msra.mxu0 %v1234
        %1284 = vmatmul.f32.gmra.mxu0 %v1240
        %v1285 = vpop.f32.mrf.mxu0
        %v1286 = vadd.f32 0.0, %v1285
        %1287 = vmatmul.f32.gmra.mxu0 %v1243
        %v1288 = vpop.f32.mrf.mxu0
        %v1289 = vadd.f32 0.0, %v1288
        %1290 = vdwg.mxu0
        %v1291 = vadd.f32 %v1124, %v1263
        %v1292 = vadd.f32 %v1147, %v1286
        %v1293 = vadd.f32 %v1127, %v1266
        %v1294 = vadd.f32 %v1150, %v1289
        %v1295 = vld [vmem:[%s16] sm:$0xff]
        %v1296 = vld [vmem:[%s16 + $0x8] sm:$0xff]
        %1298 = vset.pattern.permute.xlu0 0
        %1299 = vperm.xlu0 %1298, %v1295
        %v1300 = vpop.permute.xlu0 %1299
        %1303 = vset.pattern.permute.xlu0 0
        %1304 = vperm.xlu0 %1303, %v1296
        %v1305 = vpop.permute.xlu0 %1304
        %v1307 = vadd.f32 %v1291, %v1300
        %v1308 = vadd.f32 %v1292, %v1300
        %v1309 = vadd.f32 %v1293, %v1305
        %v1310 = vadd.f32 %v1294, %v1305
        %v1311 = vmax.f32 %v1307, 0.0
        %v1312 = vmax.f32 %v1308, 0.0
        %v1313 = vmax.f32 %v1309, 0.0
        %v1314 = vmax.f32 %v1310, 0.0
        %1315 = vst [vmem:[%s668] sm:$0xff] %v1311
        %1316 = vst [vmem:[%s668 + $0x8] sm:$0xff] %v1312
        %1317 = vst [vmem:[%s668 + $0x10] sm:$0xff] %v1313
        %1318 = vst [vmem:[%s668 + $0x18] sm:$0xff] %v1314
        %s1319 = sand.u32 %s418, 1
        %s1320 = scalar_lea.sflag [#allocation4], %s1319
        %s1321 = sand.u32 %s418, 1
        %s1322 = smul.addr %s1321, 32
        %s1323 = scalar_lea.vmem [#allocation11], %s1322
        // Predicated region
        $region109: #{tpu_custom_call.1} parent=87 // pred_check
          %p1324 = pneg %p428
        $region110: #{tpu_custom_call.1} parent=87 // pred_check_branch
          %1326 = sbr.rel (%p1324) target = $region112
        $region111: #{tpu_custom_call.1} parent=87 // pred_region
          %1328 = vsyncadd %s1320, 0
          %s1329 = smul.addr %s38, 4
          %s1330 = smul.addr %s1329, 8
          %s1331 = scalar_lea.hbm %s17, %s1330
          %s1332 = sshll.u32 %s1323, 4
          %s1333 = int_to_ptr.vmem [resolvable:$true] %s1332
          %s1334 = sshll.u32 %s1331, 4
          %s1335 = int_to_ptr.hbm [resolvable:$true] %s1334
          %1340 = dma.vmem_to_hbm [thread:$0]  %s1333, 512, %s1335, %s1320, 256, 256, 16
        $region112: #{tpu_custom_call.1} parent=87 // pred_fallthru
          _
      $region88: #{tpu_custom_call.1} parent=5 // pred_fallthru
        _
      %p1341 = scmp.le.s32.totalorder 2, %s33
      // Predicated region
      $region113: #{tpu_custom_call.1} parent=5 // pred_check
        %p1342 = pneg %p1341
      $region114: #{tpu_custom_call.1} parent=5 // pred_check_branch
        %1344 = sbr.rel (%p1342) target = $region116
      $region115: #{tpu_custom_call.1} parent=5 // pred_region
        %s1345 = ssub.s32 %s33, 2
        // Predicated region
        $region117: #{tpu_custom_call.1} parent=115 // pred_check
          %p1346 = pneg %p434
        $region118: #{tpu_custom_call.1} parent=115 // pred_check_branch
          %1348 = sbr.rel (%p1346) target = $region120
        $region119: #{tpu_custom_call.1} parent=115 // pred_region
          %s1349 = sand.u32 %s419, 1
          %s1350 = scalar_lea.sflag [#allocation4], %s1349
          %s1351 = sand.u32 %s419, 1
          %s1352 = smul.addr %s1351, 32
          %s1353 = scalar_lea.vmem [#allocation11], %s1352
          %1355 = dma.done %s1350, 512
        $region120: #{tpu_custom_call.1} parent=115 // pred_fallthru
          _
      $region116: #{tpu_custom_call.1} parent=5 // pred_fallthru
        _
    $region6: #{tpu_custom_call.1} parent=1 // loop_footer
      %s37 = sadd.s32 1, %s33
    $region7: #{tpu_custom_call.1} parent=1 // loop_footer_branch
      %32 = sbr.rel target = $region3
    $region8: #{tpu_custom_call.1} parent=1 // loop_exit
      _
    %1356 = vsyncpa [#allocation3], 1
    %s1357 = scalar_lea.sflag [#allocation3], 1
    %1358 = vsyncpa %s1357, 1
    %1359 = vsyncpa [#allocation6], 1
    %s1360 = scalar_lea.sflag [#allocation6], 1
    %1361 = vsyncpa %s1360, 1
    %1362 = vsyncpa [#allocation9], 1
    %1363 = vsyncpa [#allocation4], 1
    %s1364 = scalar_lea.sflag [#allocation4], 1
    %1365 = vsyncpa %s1364, 1

</llo_original>
